<compile_context>
chip_gen: v7x
topology: tpu7x:2x2x1
jax: 0.10.0
libtpu: 0.0.40
codegen_flags: <defaults>
</compile_context>

<pallas_src>
import functools

import jax
import jax.numpy as jnp
from jax.experimental import pallas as pl
from jax.experimental.pallas import tpu as pltpu

KSIZE = 5          # largest alternative kernel (5x5)
PAD = KSIZE // 2   # 'same' padding for the re-parameterized 5x5 conv


def supermodule_kernel(x_ref, w_ref, b_ref, m_ref, o_ref, xext_ref, patch_ref,
                       *, width, ksize, pad, b_tile):
    # x_ref    : VMEM (b_tile, Cin, H*W)          bf16 activations (NCHW flat)
    # w_ref    : VMEM (Cout, KKC)                 gs-reparameterized weight, bf16
    # b_ref    : VMEM (Cout, 1)                   gs-reparameterized bias, f32
    # m_ref    : VMEM (K, H*W)                    per-kw column-wrap masks, f32
    # o_ref    : VMEM (b_tile, Cout, H*W)         lane-dense output (NCHW flat)
    # xext_ref : VMEM (b_tile*Cin, H*W + 2*off0)  f32 zero-extended activations
    # patch_ref: VMEM (KKC, b_tile*H*W)           bf16 im2col patch matrix
    cin = x_ref.shape[1]
    hw = x_ref.shape[2]
    off0 = pad * width + pad
    n_taps = ksize * ksize
    n_taps_pad = patch_ref.shape[0] // cin        # 25 -> 26 when Cin % 16 != 0
    taps_per_store = 2 if cin % 16 != 0 else 1    # keep bf16 stores 16-row tiles

    # 1) Zero-extended flat activations: zero ONLY the pad columns (interior is
    #    fully overwritten each step); cast the bf16 stream up to f32 once so
    #    the mask multiplies stay f32 (cheap on v5e's f32-only VPU).
    for b in range(b_tile):
        r0 = b * cin
        xext_ref[r0:r0 + cin, 0:off0] = jnp.zeros((cin, off0), jnp.float32)
        xext_ref[r0:r0 + cin, off0 + hw:off0 + hw + off0] = jnp.zeros(
            (cin, off0), jnp.float32)
        xext_ref[r0:r0 + cin, off0:off0 + hw] = x_ref[b].astype(jnp.float32)

    # 2) im2col: patch[(kh*K+kw)*Cin + c, b*HW + h*W + w] = x[b,c,h+kh-pad,w+kw-pad]
    #    Row overflow lands in the zero prefix/suffix; column wrap across rows is
    #    removed by m_ref.  Taps >= n_taps are all-zero pad taps (weights are 0).
    def tap_src(b, t):
        if t >= n_taps:
            return jnp.zeros((cin, hw), jnp.float32)
        kh, kw = t // ksize, t % ksize
        r0 = b * cin
        src_off = off0 + (kh - pad) * width + (kw - pad)
        s = xext_ref[r0:r0 + cin, src_off:src_off + hw]          # (Cin, HW) f32
        if kw != pad:                                            # dx != 0 -> mask wrap
            s = s * m_ref[kw:kw + 1, :]
        return s

    for b in range(b_tile):
        c0 = b * hw
        for t0 in range(0, n_taps_pad, taps_per_store):
            if taps_per_store == 1:
                blk = tap_src(b, t0)
            else:                                                # paired 16-row store
                blk = jnp.concatenate(
                    [tap_src(b, t0 + j) for j in range(taps_per_store)], axis=0)
            patch_ref[t0 * cin:(t0 + taps_per_store) * cin,
                      c0:c0 + hw] = blk.astype(jnp.bfloat16)

    # 3) ONE MXU matmul for the whole batch block, bf16 operands / f32 acc:
    #    (Cout, KKC) @ (KKC, b_tile*HW) -> (Cout, b_tile*HW)   [lane dim = HW]
    y = jnp.dot(w_ref[...], patch_ref[...], preferred_element_type=jnp.float32)

    # 4) f32 bias add + lane-dense stores (output stays NCHW-flat, no transpose).
    for b in range(b_tile):
        o_ref[b] = (y[:, b * hw:(b + 1) * hw] + b_ref[...]).astype(o_ref.dtype)


def _pick_batch_tile(n, max_tile=8):
    """Largest divisor of n up to max_tile that keeps >= 2 grid steps (v7x has
    2 TensorCores; a single 'parallel' step would idle one of them)."""
    best = 1
    for t in range(1, min(n, max_tile) + 1):
        if n % t == 0 and (n // t >= 2 or n == 1):
            best = t
    return best


def supermodule_forward(x_nchw, params, gs_weights, *, batch_tile=None):
    """Pallas forward: sum_i gs_weights[i] * conv_i(x).  In/out are NCHW."""
    N, Cin, H, W = x_nchw.shape
    Cout = params["w5"].shape[-1]
    K = KSIZE
    HW = H * W

    assert Cin % 8 == 0, "im2col tap stores require Cin to be a multiple of 8"
    assert H >= K and W >= K, "spatial dims must cover the 5x5 kernel"
    assert HW % 128 == 0, "flat spatial size should be lane-aligned (128)"

    b_tile = batch_tile if batch_tile is not None else _pick_batch_tile(N)
    assert N % b_tile == 0

    # --- re-parameterize the three branches into ONE 5x5 conv (tiny XLA work) ---
    w1p = jnp.pad(params["w1"], ((PAD, PAD), (PAD, PAD), (0, 0), (0, 0)))
    w3p = jnp.pad(params["w3"], ((1, 1), (1, 1), (0, 0), (0, 0)))
    w_eff = (gs_weights[0] * w1p + gs_weights[1] * w3p
             + gs_weights[2] * params["w5"])                        # (5,5,Cin,Cout)
    b_eff = (gs_weights[0] * params["b1"] + gs_weights[1] * params["b3"]
             + gs_weights[2] * params["b5"])                        # (Cout,)

    # Pad taps so the bf16 patch stores are full 16-sublane tiles when Cin % 16 != 0.
    n_taps = K * K
    taps_per_store = 2 if Cin % 16 != 0 else 1
    n_taps_pad = ((n_taps + taps_per_store - 1) // taps_per_store) * taps_per_store
    KKC = n_taps_pad * Cin

    w_mat = w_eff.reshape(K * K * Cin, Cout)
    if KKC > K * K * Cin:                                           # zero pad tap(s)
        w_mat = jnp.pad(w_mat, ((0, KKC - K * K * Cin), (0, 0)))
    w_mat = w_mat.T.astype(jnp.bfloat16)                            # (Cout, KKC)
    b_col = b_eff.reshape(Cout, 1).astype(jnp.float32)

    # --- per-kw column-wrap masks (tiny, built once) ---
    col = jnp.arange(HW, dtype=jnp.int32) % W
    masks = jnp.stack(
        [((col + (kw - PAD) >= 0) & (col + (kw - PAD) < W)).astype(jnp.float32)
         for kw in range(K)])                                        # (K, HW)

    # bf16 activation stream: halves HBM->VMEM bytes for the only large input.
    x_flat = x_nchw.reshape(N, Cin, HW).astype(jnp.bfloat16)
    ext = HW + 2 * (PAD * W + PAD)                                   # flat ext length

    kernel = functools.partial(supermodule_kernel, width=W, ksize=K, pad=PAD,
                               b_tile=b_tile)

    # Explicit scoped-VMEM budget (valid on v7x 64 MiB as well as v5e/v6e 128 MiB).
    bytes_needed = (b_tile * Cin * ext * 4                      # xext scratch (f32)
                    + KKC * b_tile * HW * 2                     # patches (bf16)
                    + 2 * (b_tile * Cin * HW * 2                # double-buffered x
                           + b_tile * Cout * HW * 4)            # double-buffered out
                    + Cout * KKC * 2 + Cout * 4 + K * HW * 4)   # weights/bias/masks
    vmem_limit = int(min(max(2 * bytes_needed, 16 * 1024 * 1024), 48 * 1024 * 1024))

    out_flat = pl.pallas_call(
        kernel,
        out_shape=jax.ShapeDtypeStruct((N, Cout, HW), x_nchw.dtype),
        grid_spec=pltpu.PrefetchScalarGridSpec(
            num_scalar_prefetch=0,
            grid=(N // b_tile,),
            in_specs=[
                pl.BlockSpec((b_tile, Cin, HW), lambda n: (n, 0, 0)),
                pl.BlockSpec((Cout, KKC), lambda n: (0, 0)),
                pl.BlockSpec((Cout, 1), lambda n: (0, 0)),
                pl.BlockSpec((K, HW), lambda n: (0, 0)),
            ],
            out_specs=pl.BlockSpec((b_tile, Cout, HW), lambda n: (n, 0, 0)),
            scratch_shapes=[
                pltpu.VMEM((b_tile * Cin, ext), jnp.float32),
                pltpu.VMEM((KKC, b_tile * HW), jnp.bfloat16),
            ]),
        compiler_params=pltpu.CompilerParams(
            dimension_semantics=("parallel",),
            vmem_limit_bytes=vmem_limit),
    )(x_flat, w_mat, b_col, masks)

    return out_flat.reshape(N, Cout, H, W)       # free view -> NCHW


def gumbel_softmax(key, logits, tau=1.0):
    # F.gumbel_softmax(logits, tau=1.0, hard=False)
    u = jax.random.uniform(key, logits.shape, minval=1e-6, maxval=1.0 - 1e-6)
    g = -jnp.log(-jnp.log(u))
    return jax.nn.softmax((logits + g) / tau)


def make_params(key, cin, cout):
    ks = jax.random.split(key, 6)
    scale = 0.1
    return {
        "w1": scale * jax.random.normal(ks[0], (1, 1, cin, cout), jnp.float32),
        "b1": scale * jax.random.normal(ks[1], (cout,), jnp.float32),
        "w3": scale * jax.random.normal(ks[2], (3, 3, cin, cout), jnp.float32),
        "b3": scale * jax.random.normal(ks[3], (cout,), jnp.float32),
        "w5": scale * jax.random.normal(ks[4], (5, 5, cin, cout), jnp.float32),
        "b5": scale * jax.random.normal(ks[5], (cout,), jnp.float32),
    }


def reference_forward(x_nchw, params, gs_weights):
    """Pure-JAX reference (lax conv, f32) for sanity checking the kernel."""
    x = jnp.transpose(x_nchw, (0, 2, 3, 1))  # NHWC
    dn = ("NHWC", "HWIO", "NHWC")

    def conv(w, b):
        return jax.lax.conv_general_dilated(
            x, w, window_strides=(1, 1), padding="SAME",
            dimension_numbers=dn) + b

    y1 = conv(params["w1"], params["b1"])
    y3 = conv(params["w3"], params["b3"])
    y5 = conv(params["w5"], params["b5"])
    out = gs_weights[0] * y1 + gs_weights[1] * y3 + gs_weights[2] * y5
    return jnp.transpose(out, (0, 3, 1, 2))


if __name__ == "__main__":
    key = jax.random.PRNGKey(0)
    k_x, k_p, k_g = jax.random.split(key, 3)

    N, C, H, W = 2, 8, 16, 16
    x = jax.random.normal(k_x, (N, C, H, W), jnp.float32)
    params = make_params(k_p, C, C)

    # nn.Parameter init: ones(num_alternatives)/num_alternatives, then
    # gumbel_softmax(tau=1.0, hard=False) at forward time.
    logits = jnp.ones((3,), jnp.float32) / 3.0
    gs_weights = gumbel_softmax(k_g, logits, tau=1.0)

    out = supermodule_forward(x, params, gs_weights)
    out = jax.block_until_ready(out)

    ref = reference_forward(x, params, gs_weights)
    assert out.shape == (N, C, H, W)
    # bf16 MXU operands and bf16-streamed activations -> loosened tolerance vs
    # the f32 lax reference.
    assert jnp.allclose(out, ref, rtol=3e-2, atol=3e-2), "mismatch vs reference"

    # TODO(synk): params/FLOPs cost bookkeeping (_stable/_target_weighted_cost) and
    # the first-call _check_sanity complexity probing are host-side bookkeeping,
    # not kernel work.
    print("KERNEL_OK")
</pallas_src>

<mosaic_0001>
module attributes {stable_mosaic.version = 11 : i64} {
  func.func @supermodule_kernel(%arg0: i32, %arg1: memref<1x8x256xbf16, #tpu.memory_space<vmem>>, %arg2: memref<8x208xbf16, #tpu.memory_space<vmem>>, %arg3: memref<8x1xf32, #tpu.memory_space<vmem>>, %arg4: memref<5x256xf32, #tpu.memory_space<vmem>>, %arg5: memref<1x8x256xf32, #tpu.memory_space<vmem>>, %arg6: memref<8x324xf32, #tpu.memory_space<vmem>>, %arg7: memref<208x256xbf16, #tpu.memory_space<vmem>>) attributes {dimension_semantics = [#tpu.dimension_semantics<parallel>], iteration_bounds = array<i64: 2>, scalar_prefetch = 0 : i64, scratch_operands = 2 : i64, tpu.core_type = #tpu.core_type<tc>, window_params = [{transform_indices = @transform_0, window_bounds = array<i64: 1, 8, 256>}, {pipeline_mode = #tpu.pipeline_mode<synchronous>, transform_indices = @transform_1, window_bounds = array<i64: 8, 208>}, {pipeline_mode = #tpu.pipeline_mode<synchronous>, transform_indices = @transform_2, window_bounds = array<i64: 8, 1>}, {pipeline_mode = #tpu.pipeline_mode<synchronous>, transform_indices = @transform_3, window_bounds = array<i64: 5, 256>}, {transform_indices = @transform_4, window_bounds = array<i64: 1, 8, 256>}]} {
    %cst = arith.constant 0.000000e+00 : f32
    %0 = vector.broadcast %cst : f32 to vector<8x34xf32>
    %c0 = arith.constant 0 : index
    %c0_0 = arith.constant 0 : index
    %1 = vector.load %arg6[%c0, %c0_0] : memref<8x324xf32, #tpu.memory_space<vmem>>, vector<8x34xf32>
    tpu.vector_store %arg6[%c0, %c0_0], %0 {strides = array<i32>} : memref<8x324xf32, #tpu.memory_space<vmem>>, vector<8x34xf32>,
    %cst_1 = arith.constant 0.000000e+00 : f32
    %2 = vector.broadcast %cst_1 : f32 to vector<8x34xf32>
    %c0_2 = arith.constant 0 : index
    %c290 = arith.constant 290 : index
    %3 = vector.load %arg6[%c0_2, %c290] : memref<8x324xf32, #tpu.memory_space<vmem>>, vector<8x34xf32>
    tpu.vector_store %arg6[%c0_2, %c290], %2 {strides = array<i32>} : memref<8x324xf32, #tpu.memory_space<vmem>>, vector<8x34xf32>,
    %c0_3 = arith.constant 0 : index
    %c0_4 = arith.constant 0 : index
    %c0_5 = arith.constant 0 : index
    %4 = vector.load %arg1[%c0_3, %c0_4, %c0_5] : memref<1x8x256xbf16, #tpu.memory_space<vmem>>, vector<1x8x256xbf16>
    %5 = vector.shape_cast %4 : vector<1x8x256xbf16> to vector<8x256xbf16>
    %6 = arith.extf %5 : vector<8x256xbf16> to vector<8x256xf32>
    %c0_6 = arith.constant 0 : index
    %c34 = arith.constant 34 : index
    %7 = vector.load %arg6[%c0_6, %c34] : memref<8x324xf32, #tpu.memory_space<vmem>>, vector<8x256xf32>
    tpu.vector_store %arg6[%c0_6, %c34], %6 {strides = array<i32>} : memref<8x324xf32, #tpu.memory_space<vmem>>, vector<8x256xf32>,
    %c0_7 = arith.constant 0 : index
    %c0_8 = arith.constant 0 : index
    %8 = vector.load %arg6[%c0_7, %c0_8] : memref<8x324xf32, #tpu.memory_space<vmem>>, vector<8x256xf32>
    %c0_9 = arith.constant 0 : index
    %c0_10 = arith.constant 0 : index
    %9 = vector.load %arg4[%c0_9, %c0_10] : memref<5x256xf32, #tpu.memory_space<vmem>>, vector<1x256xf32>
    %10 = vector.broadcast %9 : vector<1x256xf32> to vector<8x256xf32>
    %11 = arith.mulf %8, %10 : vector<8x256xf32>
    %c0_11 = arith.constant 0 : index
    %c1 = arith.constant 1 : index
    %12 = vector.load %arg6[%c0_11, %c1] : memref<8x324xf32, #tpu.memory_space<vmem>>, vector<8x256xf32>
    %c1_12 = arith.constant 1 : index
    %c0_13 = arith.constant 0 : index
    %13 = vector.load %arg4[%c1_12, %c0_13] : memref<5x256xf32, #tpu.memory_space<vmem>>, vector<1x256xf32>
    %14 = vector.broadcast %13 : vector<1x256xf32> to vector<8x256xf32>
    %15 = arith.mulf %12, %14 : vector<8x256xf32>
    %16 = tpu.concatenate %11, %15 in 0 : vector<8x256xf32>, vector<8x256xf32> -> vector<16x256xf32>
    %17 = arith.truncf %16 : vector<16x256xf32> to vector<16x256xbf16>
    %c0_14 = arith.constant 0 : index
    %c0_15 = arith.constant 0 : index
    %18 = vector.load %arg7[%c0_14, %c0_15] : memref<208x256xbf16, #tpu.memory_space<vmem>>, vector<16x256xbf16>
    tpu.vector_store %arg7[%c0_14, %c0_15], %17 {strides = array<i32>} : memref<208x256xbf16, #tpu.memory_space<vmem>>, vector<16x256xbf16>,
    %c0_16 = arith.constant 0 : index
    %c2 = arith.constant 2 : index
    %19 = vector.load %arg6[%c0_16, %c2] : memref<8x324xf32, #tpu.memory_space<vmem>>, vector<8x256xf32>
    %c0_17 = arith.constant 0 : index
    %c3 = arith.constant 3 : index
    %20 = vector.load %arg6[%c0_17, %c3] : memref<8x324xf32, #tpu.memory_space<vmem>>, vector<8x256xf32>
    %c3_18 = arith.constant 3 : index
    %c0_19 = arith.constant 0 : index
    %21 = vector.load %arg4[%c3_18, %c0_19] : memref<5x256xf32, #tpu.memory_space<vmem>>, vector<1x256xf32>
    %22 = vector.broadcast %21 : vector<1x256xf32> to vector<8x256xf32>
    %23 = arith.mulf %20, %22 : vector<8x256xf32>
    %24 = tpu.concatenate %19, %23 in 0 : vector<8x256xf32>, vector<8x256xf32> -> vector<16x256xf32>
    %25 = arith.truncf %24 : vector<16x256xf32> to vector<16x256xbf16>
    %c16 = arith.constant 16 : index
    %c0_20 = arith.constant 0 : index
    %26 = vector.load %arg7[%c16, %c0_20] : memref<208x256xbf16, #tpu.memory_space<vmem>>, vector<16x256xbf16>
    tpu.vector_store %arg7[%c16, %c0_20], %25 {strides = array<i32>} : memref<208x256xbf16, #tpu.memory_space<vmem>>, vector<16x256xbf16>,
    %c0_21 = arith.constant 0 : index
    %c4 = arith.constant 4 : index
    %27 = vector.load %arg6[%c0_21, %c4] : memref<8x324xf32, #tpu.memory_space<vmem>>, vector<8x256xf32>
    %c4_22 = arith.constant 4 : index
    %c0_23 = arith.constant 0 : index
    %28 = vector.load %arg4[%c4_22, %c0_23] : memref<5x256xf32, #tpu.memory_space<vmem>>, vector<1x256xf32>
    %29 = vector.broadcast %28 : vector<1x256xf32> to vector<8x256xf32>
    %30 = arith.mulf %27, %29 : vector<8x256xf32>
    %c0_24 = arith.constant 0 : index
    %c16_25 = arith.constant 16 : index
    %31 = vector.load %arg6[%c0_24, %c16_25] : memref<8x324xf32, #tpu.memory_space<vmem>>, vector<8x256xf32>
    %c0_26 = arith.constant 0 : index
    %c0_27 = arith.constant 0 : index
    %32 = vector.load %arg4[%c0_26, %c0_27] : memref<5x256xf32, #tpu.memory_space<vmem>>, vector<1x256xf32>
    %33 = vector.broadcast %32 : vector<1x256xf32> to vector<8x256xf32>
    %34 = arith.mulf %31, %33 : vector<8x256xf32>
    %35 = tpu.concatenate %30, %34 in 0 : vector<8x256xf32>, vector<8x256xf32> -> vector<16x256xf32>
    %36 = arith.truncf %35 : vector<16x256xf32> to vector<16x256xbf16>
    %c32 = arith.constant 32 : index
    %c0_28 = arith.constant 0 : index
    %37 = vector.load %arg7[%c32, %c0_28] : memref<208x256xbf16, #tpu.memory_space<vmem>>, vector<16x256xbf16>
    tpu.vector_store %arg7[%c32, %c0_28], %36 {strides = array<i32>} : memref<208x256xbf16, #tpu.memory_space<vmem>>, vector<16x256xbf16>,
    %c0_29 = arith.constant 0 : index
    %c17 = arith.constant 17 : index
    %38 = vector.load %arg6[%c0_29, %c17] : memref<8x324xf32, #tpu.memory_space<vmem>>, vector<8x256xf32>
    %c1_30 = arith.constant 1 : index
    %c0_31 = arith.constant 0 : index
    %39 = vector.load %arg4[%c1_30, %c0_31] : memref<5x256xf32, #tpu.memory_space<vmem>>, vector<1x256xf32>
    %40 = vector.broadcast %39 : vector<1x256xf32> to vector<8x256xf32>
    %41 = arith.mulf %38, %40 : vector<8x256xf32>
    %c0_32 = arith.constant 0 : index
    %c18 = arith.constant 18 : index
    %42 = vector.load %arg6[%c0_32, %c18] : memref<8x324xf32, #tpu.memory_space<vmem>>, vector<8x256xf32>
    %43 = tpu.concatenate %41, %42 in 0 : vector<8x256xf32>, vector<8x256xf32> -> vector<16x256xf32>
    %44 = arith.truncf %43 : vector<16x256xf32> to vector<16x256xbf16>
    %c48 = arith.constant 48 : index
    %c0_33 = arith.constant 0 : index
    %45 = vector.load %arg7[%c48, %c0_33] : memref<208x256xbf16, #tpu.memory_space<vmem>>, vector<16x256xbf16>
    tpu.vector_store %arg7[%c48, %c0_33], %44 {strides = array<i32>} : memref<208x256xbf16, #tpu.memory_space<vmem>>, vector<16x256xbf16>,
    %c0_34 = arith.constant 0 : index
    %c19 = arith.constant 19 : index
    %46 = vector.load %arg6[%c0_34, %c19] : memref<8x324xf32, #tpu.memory_space<vmem>>, vector<8x256xf32>
    %c3_35 = arith.constant 3 : index
    %c0_36 = arith.constant 0 : index
    %47 = vector.load %arg4[%c3_35, %c0_36] : memref<5x256xf32, #tpu.memory_space<vmem>>, vector<1x256xf32>
    %48 = vector.broadcast %47 : vector<1x256xf32> to vector<8x256xf32>
    %49 = arith.mulf %46, %48 : vector<8x256xf32>
    %c0_37 = arith.constant 0 : index
    %c20 = arith.constant 20 : index
    %50 = vector.load %arg6[%c0_37, %c20] : memref<8x324xf32, #tpu.memory_space<vmem>>, vector<8x256xf32>
    %c4_38 = arith.constant 4 : index
    %c0_39 = arith.constant 0 : index
    %51 = vector.load %arg4[%c4_38, %c0_39] : memref<5x256xf32, #tpu.memory_space<vmem>>, vector<1x256xf32>
    %52 = vector.broadcast %51 : vector<1x256xf32> to vector<8x256xf32>
    %53 = arith.mulf %50, %52 : vector<8x256xf32>
    %54 = tpu.concatenate %49, %53 in 0 : vector<8x256xf32>, vector<8x256xf32> -> vector<16x256xf32>
    %55 = arith.truncf %54 : vector<16x256xf32> to vector<16x256xbf16>
    %c64 = arith.constant 64 : index
    %c0_40 = arith.constant 0 : index
    %56 = vector.load %arg7[%c64, %c0_40] : memref<208x256xbf16, #tpu.memory_space<vmem>>, vector<16x256xbf16>
    tpu.vector_store %arg7[%c64, %c0_40], %55 {strides = array<i32>} : memref<208x256xbf16, #tpu.memory_space<vmem>>, vector<16x256xbf16>,
    %c0_41 = arith.constant 0 : index
    %c32_42 = arith.constant 32 : index
    %57 = vector.load %arg6[%c0_41, %c32_42] : memref<8x324xf32, #tpu.memory_space<vmem>>, vector<8x256xf32>
    %c0_43 = arith.constant 0 : index
    %c0_44 = arith.constant 0 : index
    %58 = vector.load %arg4[%c0_43, %c0_44] : memref<5x256xf32, #tpu.memory_space<vmem>>, vector<1x256xf32>
    %59 = vector.broadcast %58 : vector<1x256xf32> to vector<8x256xf32>
    %60 = arith.mulf %57, %59 : vector<8x256xf32>
    %c0_45 = arith.constant 0 : index
    %c33 = arith.constant 33 : index
    %61 = vector.load %arg6[%c0_45, %c33] : memref<8x324xf32, #tpu.memory_space<vmem>>, vector<8x256xf32>
    %c1_46 = arith.constant 1 : index
    %c0_47 = arith.constant 0 : index
    %62 = vector.load %arg4[%c1_46, %c0_47] : memref<5x256xf32, #tpu.memory_space<vmem>>, vector<1x256xf32>
    %63 = vector.broadcast %62 : vector<1x256xf32> to vector<8x256xf32>
    %64 = arith.mulf %61, %63 : vector<8x256xf32>
    %65 = tpu.concatenate %60, %64 in 0 : vector<8x256xf32>, vector<8x256xf32> -> vector<16x256xf32>
    %66 = arith.truncf %65 : vector<16x256xf32> to vector<16x256xbf16>
    %c80 = arith.constant 80 : index
    %c0_48 = arith.constant 0 : index
    %67 = vector.load %arg7[%c80, %c0_48] : memref<208x256xbf16, #tpu.memory_space<vmem>>, vector<16x256xbf16>
    tpu.vector_store %arg7[%c80, %c0_48], %66 {strides = array<i32>} : memref<208x256xbf16, #tpu.memory_space<vmem>>, vector<16x256xbf16>,
    %c0_49 = arith.constant 0 : index
    %c34_50 = arith.constant 34 : index
    %68 = vector.load %arg6[%c0_49, %c34_50] : memref<8x324xf32, #tpu.memory_space<vmem>>, vector<8x256xf32>
    %c0_51 = arith.constant 0 : index
    %c35 = arith.constant 35 : index
    %69 = vector.load %arg6[%c0_51, %c35] : memref<8x324xf32, #tpu.memory_space<vmem>>, vector<8x256xf32>
    %c3_52 = arith.constant 3 : index
    %c0_53 = arith.constant 0 : index
    %70 = vector.load %arg4[%c3_52, %c0_53] : memref<5x256xf32, #tpu.memory_space<vmem>>, vector<1x256xf32>
    %71 = vector.broadcast %70 : vector<1x256xf32> to vector<8x256xf32>
    %72 = arith.mulf %69, %71 : vector<8x256xf32>
    %73 = tpu.concatenate %68, %72 in 0 : vector<8x256xf32>, vector<8x256xf32> -> vector<16x256xf32>
    %74 = arith.truncf %73 : vector<16x256xf32> to vector<16x256xbf16>
    %c96 = arith.constant 96 : index
    %c0_54 = arith.constant 0 : index
    %75 = vector.load %arg7[%c96, %c0_54] : memref<208x256xbf16, #tpu.memory_space<vmem>>, vector<16x256xbf16>
    tpu.vector_store %arg7[%c96, %c0_54], %74 {strides = array<i32>} : memref<208x256xbf16, #tpu.memory_space<vmem>>, vector<16x256xbf16>,
    %c0_55 = arith.constant 0 : index
    %c36 = arith.constant 36 : index
    %76 = vector.load %arg6[%c0_55, %c36] : memref<8x324xf32, #tpu.memory_space<vmem>>, vector<8x256xf32>
    %c4_56 = arith.constant 4 : index
    %c0_57 = arith.constant 0 : index
    %77 = vector.load %arg4[%c4_56, %c0_57] : memref<5x256xf32, #tpu.memory_space<vmem>>, vector<1x256xf32>
    %78 = vector.broadcast %77 : vector<1x256xf32> to vector<8x256xf32>
    %79 = arith.mulf %76, %78 : vector<8x256xf32>
    %c0_58 = arith.constant 0 : index
    %c48_59 = arith.constant 48 : index
    %80 = vector.load %arg6[%c0_58, %c48_59] : memref<8x324xf32, #tpu.memory_space<vmem>>, vector<8x256xf32>
    %c0_60 = arith.constant 0 : index
    %c0_61 = arith.constant 0 : index
    %81 = vector.load %arg4[%c0_60, %c0_61] : memref<5x256xf32, #tpu.memory_space<vmem>>, vector<1x256xf32>
    %82 = vector.broadcast %81 : vector<1x256xf32> to vector<8x256xf32>
    %83 = arith.mulf %80, %82 : vector<8x256xf32>
    %84 = tpu.concatenate %79, %83 in 0 : vector<8x256xf32>, vector<8x256xf32> -> vector<16x256xf32>
    %85 = arith.truncf %84 : vector<16x256xf32> to vector<16x256xbf16>
    %c112 = arith.constant 112 : index
    %c0_62 = arith.constant 0 : index
    %86 = vector.load %arg7[%c112, %c0_62] : memref<208x256xbf16, #tpu.memory_space<vmem>>, vector<16x256xbf16>
    tpu.vector_store %arg7[%c112, %c0_62], %85 {strides = array<i32>} : memref<208x256xbf16, #tpu.memory_space<vmem>>, vector<16x256xbf16>,
    %c0_63 = arith.constant 0 : index
    %c49 = arith.constant 49 : index
    %87 = vector.load %arg6[%c0_63, %c49] : memref<8x324xf32, #tpu.memory_space<vmem>>, vector<8x256xf32>
    %c1_64 = arith.constant 1 : index
    %c0_65 = arith.constant 0 : index
    %88 = vector.load %arg4[%c1_64, %c0_65] : memref<5x256xf32, #tpu.memory_space<vmem>>, vector<1x256xf32>
    %89 = vector.broadcast %88 : vector<1x256xf32> to vector<8x256xf32>
    %90 = arith.mulf %87, %89 : vector<8x256xf32>
    %c0_66 = arith.constant 0 : index
    %c50 = arith.constant 50 : index
    %91 = vector.load %arg6[%c0_66, %c50] : memref<8x324xf32, #tpu.memory_space<vmem>>, vector<8x256xf32>
    %92 = tpu.concatenate %90, %91 in 0 : vector<8x256xf32>, vector<8x256xf32> -> vector<16x256xf32>
    %93 = arith.truncf %92 : vector<16x256xf32> to vector<16x256xbf16>
    %c128 = arith.constant 128 : index
    %c0_67 = arith.constant 0 : index
    %94 = vector.load %arg7[%c128, %c0_67] : memref<208x256xbf16, #tpu.memory_space<vmem>>, vector<16x256xbf16>
    tpu.vector_store %arg7[%c128, %c0_67], %93 {strides = array<i32>} : memref<208x256xbf16, #tpu.memory_space<vmem>>, vector<16x256xbf16>,
    %c0_68 = arith.constant 0 : index
    %c51 = arith.constant 51 : index
    %95 = vector.load %arg6[%c0_68, %c51] : memref<8x324xf32, #tpu.memory_space<vmem>>, vector<8x256xf32>
    %c3_69 = arith.constant 3 : index
    %c0_70 = arith.constant 0 : index
    %96 = vector.load %arg4[%c3_69, %c0_70] : memref<5x256xf32, #tpu.memory_space<vmem>>, vector<1x256xf32>
    %97 = vector.broadcast %96 : vector<1x256xf32> to vector<8x256xf32>
    %98 = arith.mulf %95, %97 : vector<8x256xf32>
    %c0_71 = arith.constant 0 : index
    %c52 = arith.constant 52 : index
    %99 = vector.load %arg6[%c0_71, %c52] : memref<8x324xf32, #tpu.memory_space<vmem>>, vector<8x256xf32>
    %c4_72 = arith.constant 4 : index
    %c0_73 = arith.constant 0 : index
    %100 = vector.load %arg4[%c4_72, %c0_73] : memref<5x256xf32, #tpu.memory_space<vmem>>, vector<1x256xf32>
    %101 = vector.broadcast %100 : vector<1x256xf32> to vector<8x256xf32>
    %102 = arith.mulf %99, %101 : vector<8x256xf32>
    %103 = tpu.concatenate %98, %102 in 0 : vector<8x256xf32>, vector<8x256xf32> -> vector<16x256xf32>
    %104 = arith.truncf %103 : vector<16x256xf32> to vector<16x256xbf16>
    %c144 = arith.constant 144 : index
    %c0_74 = arith.constant 0 : index
    %105 = vector.load %arg7[%c144, %c0_74] : memref<208x256xbf16, #tpu.memory_space<vmem>>, vector<16x256xbf16>
    tpu.vector_store %arg7[%c144, %c0_74], %104 {strides = array<i32>} : memref<208x256xbf16, #tpu.memory_space<vmem>>, vector<16x256xbf16>,
    %c0_75 = arith.constant 0 : index
    %c64_76 = arith.constant 64 : index
    %106 = vector.load %arg6[%c0_75, %c64_76] : memref<8x324xf32, #tpu.memory_space<vmem>>, vector<8x256xf32>
    %c0_77 = arith.constant 0 : index
    %c0_78 = arith.constant 0 : index
    %107 = vector.load %arg4[%c0_77, %c0_78] : memref<5x256xf32, #tpu.memory_space<vmem>>, vector<1x256xf32>
    %108 = vector.broadcast %107 : vector<1x256xf32> to vector<8x256xf32>
    %109 = arith.mulf %106, %108 : vector<8x256xf32>
    %c0_79 = arith.constant 0 : index
    %c65 = arith.constant 65 : index
    %110 = vector.load %arg6[%c0_79, %c65] : memref<8x324xf32, #tpu.memory_space<vmem>>, vector<8x256xf32>
    %c1_80 = arith.constant 1 : index
    %c0_81 = arith.constant 0 : index
    %111 = vector.load %arg4[%c1_80, %c0_81] : memref<5x256xf32, #tpu.memory_space<vmem>>, vector<1x256xf32>
    %112 = vector.broadcast %111 : vector<1x256xf32> to vector<8x256xf32>
    %113 = arith.mulf %110, %112 : vector<8x256xf32>
    %114 = tpu.concatenate %109, %113 in 0 : vector<8x256xf32>, vector<8x256xf32> -> vector<16x256xf32>
    %115 = arith.truncf %114 : vector<16x256xf32> to vector<16x256xbf16>
    %c160 = arith.constant 160 : index
    %c0_82 = arith.constant 0 : index
    %116 = vector.load %arg7[%c160, %c0_82] : memref<208x256xbf16, #tpu.memory_space<vmem>>, vector<16x256xbf16>
    tpu.vector_store %arg7[%c160, %c0_82], %115 {strides = array<i32>} : memref<208x256xbf16, #tpu.memory_space<vmem>>, vector<16x256xbf16>,
    %c0_83 = arith.constant 0 : index
    %c66 = arith.constant 66 : index
    %117 = vector.load %arg6[%c0_83, %c66] : memref<8x324xf32, #tpu.memory_space<vmem>>, vector<8x256xf32>
    %c0_84 = arith.constant 0 : index
    %c67 = arith.constant 67 : index
    %118 = vector.load %arg6[%c0_84, %c67] : memref<8x324xf32, #tpu.memory_space<vmem>>, vector<8x256xf32>
    %c3_85 = arith.constant 3 : index
    %c0_86 = arith.constant 0 : index
    %119 = vector.load %arg4[%c3_85, %c0_86] : memref<5x256xf32, #tpu.memory_space<vmem>>, vector<1x256xf32>
    %120 = vector.broadcast %119 : vector<1x256xf32> to vector<8x256xf32>
    %121 = arith.mulf %118, %120 : vector<8x256xf32>
    %122 = tpu.concatenate %117, %121 in 0 : vector<8x256xf32>, vector<8x256xf32> -> vector<16x256xf32>
    %123 = arith.truncf %122 : vector<16x256xf32> to vector<16x256xbf16>
    %c176 = arith.constant 176 : index
    %c0_87 = arith.constant 0 : index
    %124 = vector.load %arg7[%c176, %c0_87] : memref<208x256xbf16, #tpu.memory_space<vmem>>, vector<16x256xbf16>
    tpu.vector_store %arg7[%c176, %c0_87], %123 {strides = array<i32>} : memref<208x256xbf16, #tpu.memory_space<vmem>>, vector<16x256xbf16>,
    %c0_88 = arith.constant 0 : index
    %c68 = arith.constant 68 : index
    %125 = vector.load %arg6[%c0_88, %c68] : memref<8x324xf32, #tpu.memory_space<vmem>>, vector<8x256xf32>
    %c4_89 = arith.constant 4 : index
    %c0_90 = arith.constant 0 : index
    %126 = vector.load %arg4[%c4_89, %c0_90] : memref<5x256xf32, #tpu.memory_space<vmem>>, vector<1x256xf32>
    %127 = vector.broadcast %126 : vector<1x256xf32> to vector<8x256xf32>
    %128 = arith.mulf %125, %127 : vector<8x256xf32>
    %cst_91 = arith.constant 0.000000e+00 : f32
    %129 = vector.broadcast %cst_91 : f32 to vector<8x256xf32>
    %130 = tpu.concatenate %128, %129 in 0 : vector<8x256xf32>, vector<8x256xf32> -> vector<16x256xf32>
    %131 = arith.truncf %130 : vector<16x256xf32> to vector<16x256xbf16>
    %c192 = arith.constant 192 : index
    %c0_92 = arith.constant 0 : index
    %132 = vector.load %arg7[%c192, %c0_92] : memref<208x256xbf16, #tpu.memory_space<vmem>>, vector<16x256xbf16>
    tpu.vector_store %arg7[%c192, %c0_92], %131 {strides = array<i32>} : memref<208x256xbf16, #tpu.memory_space<vmem>>, vector<16x256xbf16>,
    %c0_93 = arith.constant 0 : index
    %c0_94 = arith.constant 0 : index
    %133 = vector.load %arg2[%c0_93, %c0_94] : memref<8x208xbf16, #tpu.memory_space<vmem>>, vector<8x208xbf16>
    %c0_95 = arith.constant 0 : index
    %c0_96 = arith.constant 0 : index
    %134 = vector.load %arg7[%c0_95, %c0_96] : memref<208x256xbf16, #tpu.memory_space<vmem>>, vector<208x256xbf16>
    %cst_97 = arith.constant dense<0.000000e+00> : vector<8x256xf32>
    %135 = tpu.matmul %133, %134, %cst_97 {dimension_numbers = #tpu.dot_dimension_numbers<[1], [0], [0], [1], [0, 0, 1, 1], [], []>} : vector<8x208xbf16>, vector<208x256xbf16>, vector<8x256xf32> -> vector<8x256xf32>
    %c0_98 = arith.constant 0 : index
    %c0_99 = arith.constant 0 : index
    %136 = vector.load %arg3[%c0_98, %c0_99] : memref<8x1xf32, #tpu.memory_space<vmem>>, vector<8x1xf32>
    %137 = vector.broadcast %136 : vector<8x1xf32> to vector<8x256xf32>
    %138 = arith.addf %135, %137 : vector<8x256xf32>
    %c0_100 = arith.constant 0 : index
    %c0_101 = arith.constant 0 : index
    %c0_102 = arith.constant 0 : index
    %139 = vector.load %arg5[%c0_100, %c0_101, %c0_102] : memref<1x8x256xf32, #tpu.memory_space<vmem>>, vector<1x8x256xf32>
    %140 = vector.shape_cast %139 : vector<1x8x256xf32> to vector<8x256xf32>
    %141 = vector.shape_cast %138 : vector<8x256xf32> to vector<1x8x256xf32>
    tpu.vector_store %arg5[%c0_100, %c0_101, %c0_102], %141 {strides = array<i32>} : memref<1x8x256xf32, #tpu.memory_space<vmem>>, vector<1x8x256xf32>,
    return
  }
  func.func @transform_0(%arg0: i32) -> (i32, i32, i32) {
    %c0_i32 = arith.constant 0 : i32
    %c0_i32_0 = arith.constant 0 : i32
    %c0_i32_1 = arith.constant 0 : i32
    return %arg0, %c0_i32, %c0_i32_0 : i32, i32, i32
  }
  func.func @transform_1(%arg0: i32) -> (i32, i32) {
    %c0_i32 = arith.constant 0 : i32
    %c0_i32_0 = arith.constant 0 : i32
    %c0_i32_1 = arith.constant 0 : i32
    return %c0_i32, %c0_i32_0 : i32, i32
  }
  func.func @transform_2(%arg0: i32) -> (i32, i32) {
    %c0_i32 = arith.constant 0 : i32
    %c0_i32_0 = arith.constant 0 : i32
    %c0_i32_1 = arith.constant 0 : i32
    return %c0_i32, %c0_i32_0 : i32, i32
  }
  func.func @transform_3(%arg0: i32) -> (i32, i32) {
    %c0_i32 = arith.constant 0 : i32
    %c0_i32_0 = arith.constant 0 : i32
    %c0_i32_1 = arith.constant 0 : i32
    return %c0_i32, %c0_i32_0 : i32, i32
  }
  func.func @transform_4(%arg0: i32) -> (i32, i32, i32) {
    %c0_i32 = arith.constant 0 : i32
    %c0_i32_0 = arith.constant 0 : i32
    %c0_i32_1 = arith.constant 0 : i32
    return %arg0, %c0_i32, %c0_i32_0 : i32, i32, i32
  }
}

</mosaic_0001>

<llo_original>
// kernel: tpu_custom_call.1
$region0: #{tpu_custom_call.1}
  #allocation0 [shape = 'u32[]', space=smem, size = 0x4, offset = 0x4, fixed_abs, tag = 'smem constant byte address 0x4 - core index']
  #allocation1 [shape = 'u32[144,128]{1,0:T(1,128)}', space=vmem, size = 0x12000, scoped, tag = 'internal scratch']
  #allocation2 [shape = 'f32[8,324]{1,0:T(8,128)}', space=vmem, size = 0x3000, scoped, tag = 'scratch operand']
  #allocation3 [shape = 'bf16[208,256]{1,0:T(16,128)(2,1)}', space=vmem, size = 0x1a000, scoped, tag = 'scratch operand']
  %s0 = inlined_call_operand.hbm [shape: bf16[2,8,256], index: 0, kind: input, shape index: {}]
  %s1 = inlined_call_operand.hbm [shape: bf16[8,208], index: 1, kind: input, shape index: {}]
  %s2 = inlined_call_operand.vmem [shape: f32[8,1], index: 2, kind: input, shape index: {}]
  %s3 = inlined_call_operand.vmem [shape: f32[5,256], index: 3, kind: input, shape index: {}]
  %s4 = inlined_call_operand.hbm [shape: f32[2,8,256], index: 4, kind: output, shape index: {}]
  %s5 = sld [smem:[#allocation0]]
  $region57: #{tpu_custom_call.1} parent=0
    _
  %s7 = ssub.s32 1, %s5
  %s8 = scalar_select 0, %s7, %s5
  $region1: #{tpu_custom_call.1} parent=0
    #allocation4 [shape = 'u8[8192]{0}', space=vmem, size = 0x2000, scoped, tag = 'input window, operand 0']
    #allocation5 [shape = 's32[2]{0}', space=sflag, size = 0x8, scoped, tag = 'scoped memory for tpu_custom_call.1']
    #allocation6 [shape = 's32[2]{0}', space=sflag, size = 0x8, scoped, tag = 'scoped memory for tpu_custom_call.1']
    #allocation7 [shape = 'u8[4096]{0}', space=vmem, size = 0x1000, scoped, tag = 'input window, operand 1, single buffered']
    #allocation8 [shape = 's32[1]{0}', space=sflag, size = 0x4, scoped, tag = 'scoped memory for tpu_custom_call.1']
    #allocation9 [shape = 'u8[16384]{0}', space=vmem, size = 0x4000, scoped, tag = 'output window, operand 0']
    %9 = vsyncpa [#allocation5], 0
    %s10 = scalar_lea.sflag [#allocation5], 1
    %11 = vsyncpa %s10, 0
    %12 = vsyncpa [#allocation8], 0
    %13 = vsyncpa [#allocation6], 0
    %s14 = scalar_lea.sflag [#allocation6], 1
    %15 = vsyncpa %s14, 0
    loop: start=0, step=1, limit=4
    $region2: #{tpu_custom_call.1} parent=1 // loop_pre_header
      _
    $region3: #{tpu_custom_call.1} parent=1 // loop_header
      %s17 = sphi 0, %s21
      %p18 = scmp.ge.s32.totalorder %s17, 4
      %s27 = sphi 0, %s29
      %s30 = sphi 0, %s27
      %s31 = sphi 0, %s30
      %s47 = sphi 0, %s31
      %s51 = sphi 0, %s51
      %s53 = sphi 0, %s51
      %s54 = sphi 0, %s53
      %s68 = sphi 0, %s54
      %s72 = sphi 0, %s72
      %s74 = sphi 0, %s72
      %s75 = sphi 0, %s74
      %s89 = sphi 0, %s75
      %s93 = sphi 0, %s93
      %s95 = sphi 0, %s93
      %s96 = sphi 0, %s95
      %s110 = sphi 0, %s96
      %s116 = sphi 0, %s118
      %s119 = sphi 0, %s116
      %s120 = sphi 0, %s119
      %s136 = sphi 0, %s120
    $region4: #{tpu_custom_call.1} parent=1 // loop_header_branch
      %20 = sbr.rel (%p18) target = $region8
    $region5: #{tpu_custom_call.1} parent=1 // loop_body
      %s22 = ssub.s32 %s17, 1
      %s23 = ssub.s32 %s17, 2
      %s24 = sadd.s32 %s17, 1
      %s25 = ssub.s32 %s17, %s24
      %p26 = scmp.eq.s32.totalorder %s25, 0
      %s28 = sadd.s32 %s27, 1
      %s29 = scalar_select %p26, %s27, %s28
      %p32 = pneg %p26
      %p33 = scmp.eq.s32.totalorder %s17, 1
      %p34 = por %p32, %p33
      %p35 = scmp.ne.s32.totalorder %s27, %s30
      %p36 = scmp.eq.s32.totalorder %s17, 0
      %p37 = por %p35, %p36
      %p38 = scmp.ne.s32.totalorder %s27, %s30
      %p39 = scmp.eq.s32.totalorder %s22, 1
      %p40 = por %p38, %p39
      %p41 = scmp.ne.s32.totalorder %s30, %s31
      %p42 = scmp.eq.s32.totalorder %s22, 0
      %p43 = por %p41, %p42
      %p44 = scmp.ne.s32.totalorder %s30, %s31
      %p45 = scmp.eq.s32.totalorder %s23, 1
      %p46 = por %p44, %p45
      %p48 = scmp.ne.s32.totalorder %s31, %s47
      %p49 = scmp.eq.s32.totalorder %s23, 0
      %p50 = por %p48, %p49
      %s52 = sadd.s32 %s51, 1
      %p55 = scmp.eq.s32.totalorder %s17, 1
      %p56 = scmp.ne.s32.totalorder %s51, %s53
      %p57 = scmp.eq.s32.totalorder %s17, 0
      %p58 = por %p56, %p57
      %p59 = scmp.ne.s32.totalorder %s51, %s53
      %p60 = scmp.eq.s32.totalorder %s22, 1
      %p61 = por %p59, %p60
      %p62 = scmp.ne.s32.totalorder %s53, %s54
      %p63 = scmp.eq.s32.totalorder %s22, 0
      %p64 = por %p62, %p63
      %p65 = scmp.ne.s32.totalorder %s53, %s54
      %p66 = scmp.eq.s32.totalorder %s23, 1
      %p67 = por %p65, %p66
      %p69 = scmp.ne.s32.totalorder %s54, %s68
      %p70 = scmp.eq.s32.totalorder %s23, 0
      %p71 = por %p69, %p70
      %s73 = sadd.s32 %s72, 1
      %p76 = scmp.eq.s32.totalorder %s17, 1
      %p77 = scmp.ne.s32.totalorder %s72, %s74
      %p78 = scmp.eq.s32.totalorder %s17, 0
      %p79 = por %p77, %p78
      %p80 = scmp.ne.s32.totalorder %s72, %s74
      %p81 = scmp.eq.s32.totalorder %s22, 1
      %p82 = por %p80, %p81
      %p83 = scmp.ne.s32.totalorder %s74, %s75
      %p84 = scmp.eq.s32.totalorder %s22, 0
      %p85 = por %p83, %p84
      %p86 = scmp.ne.s32.totalorder %s74, %s75
      %p87 = scmp.eq.s32.totalorder %s23, 1
      %p88 = por %p86, %p87
      %p90 = scmp.ne.s32.totalorder %s75, %s89
      %p91 = scmp.eq.s32.totalorder %s23, 0
      %p92 = por %p90, %p91
      %s94 = sadd.s32 %s93, 1
      %p97 = scmp.eq.s32.totalorder %s17, 1
      %p98 = scmp.ne.s32.totalorder %s93, %s95
      %p99 = scmp.eq.s32.totalorder %s17, 0
      %p100 = por %p98, %p99
      %p101 = scmp.ne.s32.totalorder %s93, %s95
      %p102 = scmp.eq.s32.totalorder %s22, 1
      %p103 = por %p101, %p102
      %p104 = scmp.ne.s32.totalorder %s95, %s96
      %p105 = scmp.eq.s32.totalorder %s22, 0
      %p106 = por %p104, %p105
      %p107 = scmp.ne.s32.totalorder %s95, %s96
      %p108 = scmp.eq.s32.totalorder %s23, 1
      %p109 = por %p107, %p108
      %p111 = scmp.ne.s32.totalorder %s96, %s110
      %p112 = scmp.eq.s32.totalorder %s23, 0
      %p113 = por %p111, %p112
      %s114 = ssub.s32 %s17, %s24
      %p115 = scmp.eq.s32.totalorder %s114, 0
      %s117 = sadd.s32 %s116, 1
      %s118 = scalar_select %p115, %s116, %s117
      %p121 = pneg %p115
      %p122 = scmp.eq.s32.totalorder %s17, 1
      %p123 = por %p121, %p122
      %p124 = scmp.ne.s32.totalorder %s116, %s119
      %p125 = scmp.eq.s32.totalorder %s17, 0
      %p126 = por %p124, %p125
      %p127 = scmp.ne.s32.totalorder %s116, %s119
      %p128 = scmp.eq.s32.totalorder %s22, 1
      %p129 = por %p127, %p128
      %p130 = scmp.ne.s32.totalorder %s119, %s120
      %p131 = scmp.eq.s32.totalorder %s22, 0
      %p132 = por %p130, %p131
      %p133 = scmp.ne.s32.totalorder %s119, %s120
      %p134 = scmp.eq.s32.totalorder %s23, 1
      %p135 = por %p133, %p134
      %p137 = scmp.ne.s32.totalorder %s120, %s136
      %p138 = scmp.eq.s32.totalorder %s23, 0
      %p139 = por %p137, %p138
      %p140 = scmp.le.s32.totalorder 1, %s17
      %p141 = scmp.lt.s32.totalorder %s17, 3
      %p142 = pnand %p140, %p141
      %p143 = pneg %p142
      // Predicated region
      $region9: #{tpu_custom_call.1} parent=5 // pred_check
        _
      $region10: #{tpu_custom_call.1} parent=5 // pred_check_branch
        %145 = sbr.rel (%p142) target = $region12
      $region11: #{tpu_custom_call.1} parent=5 // pred_region
        %s146 = ssub.s32 %s17, 1
        // Predicated region
        $region13: #{tpu_custom_call.1} parent=11 // pred_check
          %p147 = pneg %p64
        $region14: #{tpu_custom_call.1} parent=11 // pred_check_branch
          %149 = sbr.rel (%p147) target = $region16
        $region15: #{tpu_custom_call.1} parent=11 // pred_region
          %s151 = ssub.s32 128, 128
          %152 = vsyncadd [#allocation8], %s151
          %s154 = sshll.u32 [#allocation7], 4
          %s155 = int_to_ptr.vmem [resolvable:$true] %s154
          %157 = dma.hbm_to_vmem [thread:$0]  %s1, 128, %s155, [#allocation8]
        $region16: #{tpu_custom_call.1} parent=11 // pred_fallthru
          _
        // Predicated region
        $region17: #{tpu_custom_call.1} parent=11 // pred_check
          %p158 = pneg %p85
        $region18: #{tpu_custom_call.1} parent=11 // pred_check_branch
          %160 = sbr.rel (%p158) target = $region20
        $region19: #{tpu_custom_call.1} parent=11 // pred_region
          _
        $region20: #{tpu_custom_call.1} parent=11 // pred_fallthru
          _
        // Predicated region
        $region21: #{tpu_custom_call.1} parent=11 // pred_check
          %p161 = pneg %p106
        $region22: #{tpu_custom_call.1} parent=11 // pred_check_branch
          %163 = sbr.rel (%p161) target = $region24
        $region23: #{tpu_custom_call.1} parent=11 // pred_region
          _
        $region24: #{tpu_custom_call.1} parent=11 // pred_fallthru
          _
      $region12: #{tpu_custom_call.1} parent=5 // pred_fallthru
        _
      %p164 = scmp.lt.s32.totalorder %s17, 2
      // Predicated region
      $region25: #{tpu_custom_call.1} parent=5 // pred_check
        %p165 = pneg %p164
      $region26: #{tpu_custom_call.1} parent=5 // pred_check_branch
        %167 = sbr.rel (%p165) target = $region28
      $region27: #{tpu_custom_call.1} parent=5 // pred_region
        // Predicated region
        $region29: #{tpu_custom_call.1} parent=27 // pred_check
          %p168 = pneg %p37
        $region30: #{tpu_custom_call.1} parent=27 // pred_check_branch
          %170 = sbr.rel (%p168) target = $region32
        $region31: #{tpu_custom_call.1} parent=27 // pred_region
          %s171 = sand.u32 %s27, 1
          %s172 = scalar_lea.sflag [#allocation5], %s171
          %s173 = sand.u32 %s27, 1
          %s174 = smul.addr %s173, 8
          %s175 = scalar_lea.vmem [#allocation4], %s174
          %s177 = ssub.s32 128, 128
          %178 = vsyncadd %s172, %s177
          %s179 = smul.addr %s17, 2
          %s180 = smul.addr %s179, 64
          %s181 = scalar_lea.hbm %s0, %s180
          %s183 = sshll.u32 %s175, 4
          %s184 = int_to_ptr.vmem [resolvable:$true] %s183
          %186 = dma.hbm_to_vmem [thread:$0]  %s181, 128, %s184, %s172
        $region32: #{tpu_custom_call.1} parent=27 // pred_fallthru
          _
      $region28: #{tpu_custom_call.1} parent=5 // pred_fallthru
        _
      %p187 = scmp.le.s32.totalorder 1, %s17
      %p188 = scmp.lt.s32.totalorder %s17, 3
      %p189 = pnand %p187, %p188
      %p190 = pneg %p189
      // Predicated region
      $region33: #{tpu_custom_call.1} parent=5 // pred_check
        _
      $region34: #{tpu_custom_call.1} parent=5 // pred_check_branch
        %192 = sbr.rel (%p189) target = $region36
      $region35: #{tpu_custom_call.1} parent=5 // pred_region
        %s193 = ssub.s32 %s17, 1
        %s194 = sand.u32 %s30, 1
        %s195 = scalar_lea.sflag [#allocation5], %s194
        %s196 = sand.u32 %s30, 1
        %s197 = smul.addr %s196, 8
        %s198 = scalar_lea.vmem [#allocation4], %s197
        // Predicated region
        $region37: #{tpu_custom_call.1} parent=35 // pred_check
          %p199 = pneg %p43
        $region38: #{tpu_custom_call.1} parent=35 // pred_check_branch
          %201 = sbr.rel (%p199) target = $region40
        $region39: #{tpu_custom_call.1} parent=35 // pred_region
          %202 = dma.done %s195, 128
        $region40: #{tpu_custom_call.1} parent=35 // pred_fallthru
          _
        // Predicated region
        $region41: #{tpu_custom_call.1} parent=35 // pred_check
          %p203 = pneg %p64
        $region42: #{tpu_custom_call.1} parent=35 // pred_check_branch
          %205 = sbr.rel (%p203) target = $region44
        $region43: #{tpu_custom_call.1} parent=35 // pred_region
          %206 = dma.done [#allocation8], 128
        $region44: #{tpu_custom_call.1} parent=35 // pred_fallthru
          _
        %s207 = sand.u32 %s30, 1
        %s208 = scalar_lea.sflag [#allocation5], %s207
        %s209 = sand.u32 %s30, 1
        %s210 = smul.addr %s209, 8
        %s211 = scalar_lea.vmem [#allocation4], %s210
        %p212 = pneg %p43
        %p213 = pneg %p40
        %p214 = pneg %p64
        %p215 = pneg %p61
        %p216 = pneg %p85
        %p217 = pneg %p82
        %p218 = pneg %p106
        %p219 = pneg %p103
        %p220 = pneg %p132
        %p221 = pneg %p129
        %s222 = sand.u32 %s119, 1
        %s223 = scalar_lea.sflag [#allocation6], %s222
        %s224 = sand.u32 %s119, 1
        %s225 = smul.addr %s224, 16
        %s226 = scalar_lea.vmem [#allocation9], %s225
        %vm228 = vcmask 277504
        %229 = vst.msk [vmem:[#allocation2] sm:$0xff] %vm228, 0.0
        %vm230 = vcmask 556304
        %231 = vst.msk [vmem:[#allocation2 + $0x10] sm:$0xff] %vm230, 0.0
        %v232 = vld [vmem:[%s198] sm:$0xff]
        %v233 = vunpack.c.l.bf16 %v232
        %v234 = vunpack.c.h.bf16 %v232
        %237 = vrot.lane.b32.xlu0 %v233, 34
        %v238 = vpop.permute.xlu0 %237
        %239 = vrot.lane.b32.xlu0 %v234, 34
        %v240 = vpop.permute.xlu0 %239
        %v241 = vsel %vm228, %v238, %v240
        %vm245 = vcmask 1047824
        %246 = vst.msk [vmem:[#allocation2] sm:$0xff] %vm245, %v238
        %247 = vst [vmem:[#allocation2 + $0x8] sm:$0xff] %v241
        %248 = vst.msk [vmem:[#allocation2 + $0x10] sm:$0xff] %vm228, %v240
        %v249 = vld [vmem:[#allocation2] sm:$0xff]
        %v250 = vld [vmem:[#allocation2 + $0x8] sm:$0xff]
        %v251 = vld [vmem:[%s3] ss:$8 sm:$0x3]
        %v253 = vlaneseq
        %v254 = vshrl.u32 %v253, 7
        %v255 = vsub.s32 0, %v254
        %v256 = vrot.slane %v251, %v255
        %v257 = vlaneseq
        %v258 = vshrl.u32 %v257, 7
        %v259 = vsub.s32 1, %v258
        %v260 = vrot.slane %v251, %v259
        %v263 = vmul.f32 %v249, %v256
        %v264 = vmul.f32 %v250, %v260
        %v265 = vld [vmem:[#allocation2 + $0x10] sm:$0xff]
        %s266 = scalar_lea.vmem %s3, 1
        %v267 = vld [vmem:[%s266] ss:$8 sm:$0x3]
        %v269 = vlaneseq
        %v270 = vshrl.u32 %v269, 7
        %v271 = vsub.s32 0, %v270
        %v272 = vrot.slane %v267, %v271
        %v273 = vlaneseq
        %v274 = vshrl.u32 %v273, 7
        %v275 = vsub.s32 1, %v274
        %v276 = vrot.slane %v267, %v275
        %277 = vrot.lane.b32.xlu0 %v272, 1
        %v278 = vpop.permute.xlu0 %277
        %279 = vrot.lane.b32.xlu0 %v276, 1
        %v280 = vpop.permute.xlu0 %279
        %vm281 = vcmask 7168
        %v282 = vsel %vm281, %v278, %v280
        %v286 = vmul.f32 %v249, %v278
        %v287 = vmul.f32 %v250, %v282
        %v288 = vmul.f32 %v265, %v280
        %292 = vrot.lane.b32.xlu0 %v286, 127
        %v293 = vpop.permute.xlu0 %292
        %294 = vrot.lane.b32.xlu0 %v287, 127
        %v295 = vpop.permute.xlu0 %294
        %296 = vrot.lane.b32.xlu0 %v288, 127
        %v297 = vpop.permute.xlu0 %296
        %vm298 = vcmask 1039360
        %v299 = vsel %vm298, %v293, %v295
        %v300 = vsel %vm298, %v295, %v297
        %v303 = vpack.c.bf16 %v299, %v263
        %v304 = vpack.c.bf16 %v300, %v264
        %305 = vst [vmem:[#allocation3] sm:$0xff] %v303
        %306 = vst [vmem:[#allocation3 + $0x8] sm:$0xff] %v304
        %v307 = vld [vmem:[#allocation2] sm:$0xff]
        %v308 = vld [vmem:[#allocation2 + $0x8] sm:$0xff]
        %v309 = vld [vmem:[#allocation2 + $0x10] sm:$0xff]
        %s310 = scalar_lea.vmem %s3, 3
        %v311 = vld [vmem:[%s310] ss:$8 sm:$0x3]
        %v313 = vlaneseq
        %v314 = vshrl.u32 %v313, 7
        %v315 = vsub.s32 0, %v314
        %v316 = vrot.slane %v311, %v315
        %v317 = vlaneseq
        %v318 = vshrl.u32 %v317, 7
        %v319 = vsub.s32 1, %v318
        %v320 = vrot.slane %v311, %v319
        %321 = vrot.lane.b32.xlu0 %v316, 3
        %v322 = vpop.permute.xlu0 %321
        %323 = vrot.lane.b32.xlu0 %v320, 3
        %v324 = vpop.permute.xlu0 %323
        %vm325 = vcmask 23552
        %v326 = vsel %vm325, %v322, %v324
        %v330 = vmul.f32 %v307, %v322
        %v331 = vmul.f32 %v308, %v326
        %v332 = vmul.f32 %v309, %v324
        %336 = vrot.lane.b32.xlu0 %v330, 127
        %v337 = vpop.permute.xlu0 %336
        %338 = vrot.lane.b32.xlu0 %v331, 127
        %v339 = vpop.permute.xlu0 %338
        %340 = vrot.lane.b32.xlu0 %v332, 127
        %v341 = vpop.permute.xlu0 %340
        %v342 = vsel %vm298, %v337, %v339
        %v343 = vsel %vm298, %v339, %v341
        %v347 = vpack.c.bf16 %v342, %v307
        %v348 = vpack.c.bf16 %v343, %v308
        %v349 = vpack.c.bf16 %v341, %v309
        %353 = vrot.lane.b32.xlu0 %v347, 126
        %v354 = vpop.permute.xlu0 %353
        %355 = vrot.lane.b32.xlu0 %v348, 126
        %v356 = vpop.permute.xlu0 %355
        %357 = vrot.lane.b32.xlu0 %v349, 126
        %v358 = vpop.permute.xlu0 %357
        %vm359 = vcmask 1031168
        %v360 = vsel %vm359, %v354, %v356
        %v361 = vsel %vm359, %v356, %v358
        %364 = vst [vmem:[#allocation3 + $0x10] sm:$0xff] %v360
        %365 = vst [vmem:[#allocation3 + $0x18] sm:$0xff] %v361
        %v366 = vld [vmem:[#allocation2] sm:$0xff]
        %v367 = vld [vmem:[#allocation2 + $0x8] sm:$0xff]
        %v368 = vld [vmem:[#allocation2 + $0x10] sm:$0xff]
        %s369 = scalar_lea.vmem %s3, 4
        %v370 = vld [vmem:[%s369] ss:$8 sm:$0x3]
        %v372 = vlaneseq
        %v373 = vshrl.u32 %v372, 7
        %v374 = vsub.s32 0, %v373
        %v375 = vrot.slane %v370, %v374
        %v376 = vlaneseq
        %v377 = vshrl.u32 %v376, 7
        %v378 = vsub.s32 1, %v377
        %v379 = vrot.slane %v370, %v378
        %380 = vrot.lane.b32.xlu0 %v375, 4
        %v381 = vpop.permute.xlu0 %380
        %382 = vrot.lane.b32.xlu0 %v379, 4
        %v383 = vpop.permute.xlu0 %382
        %vm384 = vcmask 31744
        %v385 = vsel %vm384, %v381, %v383
        %v389 = vmul.f32 %v366, %v381
        %v390 = vmul.f32 %v367, %v385
        %v391 = vmul.f32 %v368, %v383
        %v392 = vld [vmem:[%s3] ss:$8 sm:$0x3]
        %v394 = vlaneseq
        %v395 = vshrl.u32 %v394, 7
        %v396 = vsub.s32 0, %v395
        %v397 = vrot.slane %v392, %v396
        %v398 = vlaneseq
        %v399 = vshrl.u32 %v398, 7
        %v400 = vsub.s32 1, %v399
        %v401 = vrot.slane %v392, %v400
        %402 = vrot.lane.b32.xlu0 %v397, 16
        %v403 = vpop.permute.xlu0 %402
        %404 = vrot.lane.b32.xlu0 %v401, 16
        %v405 = vpop.permute.xlu0 %404
        %vm406 = vcmask 130048
        %v407 = vsel %vm406, %v403, %v405
        %v411 = vmul.f32 %v366, %v403
        %v412 = vmul.f32 %v367, %v407
        %v413 = vmul.f32 %v368, %v405
        %417 = vrot.lane.b32.xlu0 %v411, 116
        %v418 = vpop.permute.xlu0 %417
        %419 = vrot.lane.b32.xlu0 %v412, 116
        %v420 = vpop.permute.xlu0 %419
        %421 = vrot.lane.b32.xlu0 %v413, 116
        %v422 = vpop.permute.xlu0 %421
        %vm423 = vcmask 949248
        %v424 = vsel %vm423, %v418, %v420
        %v425 = vsel %vm423, %v420, %v422
        %v429 = vpack.c.bf16 %v424, %v389
        %v430 = vpack.c.bf16 %v425, %v390
        %v431 = vpack.c.bf16 %v422, %v391
        %435 = vrot.lane.b32.xlu0 %v429, 124
        %v436 = vpop.permute.xlu0 %435
        %437 = vrot.lane.b32.xlu0 %v430, 124
        %v438 = vpop.permute.xlu0 %437
        %439 = vrot.lane.b32.xlu0 %v431, 124
        %v440 = vpop.permute.xlu0 %439
        %vm441 = vcmask 1014784
        %v442 = vsel %vm441, %v436, %v438
        %v443 = vsel %vm441, %v438, %v440
        %446 = vst [vmem:[#allocation3 + $0x20] sm:$0xff] %v442
        %447 = vst [vmem:[#allocation3 + $0x28] sm:$0xff] %v443
        %v448 = vld [vmem:[#allocation2] sm:$0xff]
        %v449 = vld [vmem:[#allocation2 + $0x8] sm:$0xff]
        %v450 = vld [vmem:[#allocation2 + $0x10] sm:$0xff]
        %v451 = vld [vmem:[%s266] ss:$8 sm:$0x3]
        %v453 = vlaneseq
        %v454 = vshrl.u32 %v453, 7
        %v455 = vsub.s32 0, %v454
        %v456 = vrot.slane %v451, %v455
        %v457 = vlaneseq
        %v458 = vshrl.u32 %v457, 7
        %v459 = vsub.s32 1, %v458
        %v460 = vrot.slane %v451, %v459
        %461 = vrot.lane.b32.xlu0 %v456, 17
        %v462 = vpop.permute.xlu0 %461
        %463 = vrot.lane.b32.xlu0 %v460, 17
        %v464 = vpop.permute.xlu0 %463
        %vm465 = vcmask 138240
        %v466 = vsel %vm465, %v462, %v464
        %v470 = vmul.f32 %v448, %v462
        %v471 = vmul.f32 %v449, %v466
        %v472 = vmul.f32 %v450, %v464
        %476 = vrot.lane.b32.xlu0 %v448, 127
        %v477 = vpop.permute.xlu0 %476
        %478 = vrot.lane.b32.xlu0 %v449, 127
        %v479 = vpop.permute.xlu0 %478
        %480 = vrot.lane.b32.xlu0 %v450, 127
        %v481 = vpop.permute.xlu0 %480
        %v482 = vsel %vm298, %v477, %v479
        %v483 = vsel %vm298, %v479, %v481
        %v487 = vpack.c.bf16 %v482, %v470
        %v488 = vpack.c.bf16 %v483, %v471
        %v489 = vpack.c.bf16 %v481, %v472
        %493 = vrot.lane.b32.xlu0 %v487, 111
        %v494 = vpop.permute.xlu0 %493
        %495 = vrot.lane.b32.xlu0 %v488, 111
        %v496 = vpop.permute.xlu0 %495
        %497 = vrot.lane.b32.xlu0 %v489, 111
        %v498 = vpop.permute.xlu0 %497
        %vm499 = vcmask 908288
        %v500 = vsel %vm499, %v494, %v496
        %v501 = vsel %vm499, %v496, %v498
        %504 = vst [vmem:[#allocation3 + $0x30] sm:$0xff] %v500
        %505 = vst [vmem:[#allocation3 + $0x38] sm:$0xff] %v501
        %v506 = vld [vmem:[#allocation2] sm:$0xff]
        %v507 = vld [vmem:[#allocation2 + $0x8] sm:$0xff]
        %v508 = vld [vmem:[#allocation2 + $0x10] sm:$0xff]
        %v509 = vld [vmem:[%s310] ss:$8 sm:$0x3]
        %v511 = vlaneseq
        %v512 = vshrl.u32 %v511, 7
        %v513 = vsub.s32 0, %v512
        %v514 = vrot.slane %v509, %v513
        %v515 = vlaneseq
        %v516 = vshrl.u32 %v515, 7
        %v517 = vsub.s32 1, %v516
        %v518 = vrot.slane %v509, %v517
        %519 = vrot.lane.b32.xlu0 %v514, 19
        %v520 = vpop.permute.xlu0 %519
        %521 = vrot.lane.b32.xlu0 %v518, 19
        %v522 = vpop.permute.xlu0 %521
        %vm523 = vcmask 154624
        %v524 = vsel %vm523, %v520, %v522
        %v528 = vmul.f32 %v506, %v520
        %v529 = vmul.f32 %v507, %v524
        %v530 = vmul.f32 %v508, %v522
        %v531 = vld [vmem:[%s369] ss:$8 sm:$0x3]
        %v533 = vlaneseq
        %v534 = vshrl.u32 %v533, 7
        %v535 = vsub.s32 0, %v534
        %v536 = vrot.slane %v531, %v535
        %v537 = vlaneseq
        %v538 = vshrl.u32 %v537, 7
        %v539 = vsub.s32 1, %v538
        %v540 = vrot.slane %v531, %v539
        %541 = vrot.lane.b32.xlu0 %v536, 20
        %v542 = vpop.permute.xlu0 %541
        %543 = vrot.lane.b32.xlu0 %v540, 20
        %v544 = vpop.permute.xlu0 %543
        %vm545 = vcmask 162816
        %v546 = vsel %vm545, %v542, %v544
        %v550 = vmul.f32 %v506, %v542
        %v551 = vmul.f32 %v507, %v546
        %v552 = vmul.f32 %v508, %v544
        %556 = vrot.lane.b32.xlu0 %v550, 127
        %v557 = vpop.permute.xlu0 %556
        %558 = vrot.lane.b32.xlu0 %v551, 127
        %v559 = vpop.permute.xlu0 %558
        %560 = vrot.lane.b32.xlu0 %v552, 127
        %v561 = vpop.permute.xlu0 %560
        %v562 = vsel %vm298, %v557, %v559
        %v563 = vsel %vm298, %v559, %v561
        %v567 = vpack.c.bf16 %v562, %v528
        %v568 = vpack.c.bf16 %v563, %v529
        %v569 = vpack.c.bf16 %v561, %v530
        %573 = vrot.lane.b32.xlu0 %v567, 109
        %v574 = vpop.permute.xlu0 %573
        %575 = vrot.lane.b32.xlu0 %v568, 109
        %v576 = vpop.permute.xlu0 %575
        %577 = vrot.lane.b32.xlu0 %v569, 109
        %v578 = vpop.permute.xlu0 %577
        %vm579 = vcmask 891904
        %v580 = vsel %vm579, %v574, %v576
        %v581 = vsel %vm579, %v576, %v578
        %584 = vst [vmem:[#allocation3 + $0x40] sm:$0xff] %v580
        %585 = vst [vmem:[#allocation3 + $0x48] sm:$0xff] %v581
        %v586 = vld [vmem:[#allocation2] sm:$0xff]
        %v587 = vld [vmem:[#allocation2 + $0x8] sm:$0xff]
        %v588 = vld [vmem:[#allocation2 + $0x10] sm:$0xff]
        %v589 = vld [vmem:[%s3] ss:$8 sm:$0x3]
        %v591 = vlaneseq
        %v592 = vshrl.u32 %v591, 7
        %v593 = vsub.s32 0, %v592
        %v594 = vrot.slane %v589, %v593
        %v595 = vlaneseq
        %v596 = vshrl.u32 %v595, 7
        %v597 = vsub.s32 1, %v596
        %v598 = vrot.slane %v589, %v597
        %599 = vrot.lane.b32.xlu0 %v594, 32
        %v600 = vpop.permute.xlu0 %599
        %601 = vrot.lane.b32.xlu0 %v598, 32
        %v602 = vpop.permute.xlu0 %601
        %vm603 = vcmask 261120
        %v604 = vsel %vm603, %v600, %v602
        %v608 = vmul.f32 %v586, %v600
        %v609 = vmul.f32 %v587, %v604
        %v610 = vmul.f32 %v588, %v602
        %v611 = vld [vmem:[%s266] ss:$8 sm:$0x3]
        %v613 = vlaneseq
        %v614 = vshrl.u32 %v613, 7
        %v615 = vsub.s32 0, %v614
        %v616 = vrot.slane %v611, %v615
        %v617 = vlaneseq
        %v618 = vshrl.u32 %v617, 7
        %v619 = vsub.s32 1, %v618
        %v620 = vrot.slane %v611, %v619
        %621 = vrot.lane.b32.xlu0 %v616, 33
        %v622 = vpop.permute.xlu0 %621
        %623 = vrot.lane.b32.xlu0 %v620, 33
        %v624 = vpop.permute.xlu0 %623
        %vm625 = vcmask 269312
        %v626 = vsel %vm625, %v622, %v624
        %v630 = vmul.f32 %v586, %v622
        %v631 = vmul.f32 %v587, %v626
        %v632 = vmul.f32 %v588, %v624
        %636 = vrot.lane.b32.xlu0 %v630, 127
        %v637 = vpop.permute.xlu0 %636
        %638 = vrot.lane.b32.xlu0 %v631, 127
        %v639 = vpop.permute.xlu0 %638
        %640 = vrot.lane.b32.xlu0 %v632, 127
        %v641 = vpop.permute.xlu0 %640
        %v642 = vsel %vm298, %v637, %v639
        %v643 = vsel %vm298, %v639, %v641
        %v647 = vpack.c.bf16 %v642, %v608
        %v648 = vpack.c.bf16 %v643, %v609
        %v649 = vpack.c.bf16 %v641, %v610
        %653 = vrot.lane.b32.xlu0 %v647, 96
        %v654 = vpop.permute.xlu0 %653
        %655 = vrot.lane.b32.xlu0 %v648, 96
        %v656 = vpop.permute.xlu0 %655
        %657 = vrot.lane.b32.xlu0 %v649, 96
        %v658 = vpop.permute.xlu0 %657
        %vm659 = vcmask 785408
        %v660 = vsel %vm659, %v654, %v656
        %v661 = vsel %vm659, %v656, %v658
        %664 = vst [vmem:[#allocation3 + $0x50] sm:$0xff] %v660
        %665 = vst [vmem:[#allocation3 + $0x58] sm:$0xff] %v661
        %v666 = vld [vmem:[#allocation2] sm:$0xff]
        %v667 = vld [vmem:[#allocation2 + $0x8] sm:$0xff]
        %v668 = vld [vmem:[#allocation2 + $0x10] sm:$0xff]
        %v669 = vld [vmem:[%s310] ss:$8 sm:$0x3]
        %v671 = vlaneseq
        %v672 = vshrl.u32 %v671, 7
        %v673 = vsub.s32 0, %v672
        %v674 = vrot.slane %v669, %v673
        %v675 = vlaneseq
        %v676 = vshrl.u32 %v675, 7
        %v677 = vsub.s32 1, %v676
        %v678 = vrot.slane %v669, %v677
        %679 = vrot.lane.b32.xlu0 %v674, 35
        %v680 = vpop.permute.xlu0 %679
        %681 = vrot.lane.b32.xlu0 %v678, 35
        %v682 = vpop.permute.xlu0 %681
        %vm683 = vcmask 285696
        %v684 = vsel %vm683, %v680, %v682
        %v688 = vmul.f32 %v666, %v680
        %v689 = vmul.f32 %v667, %v684
        %v690 = vmul.f32 %v668, %v682
        %694 = vrot.lane.b32.xlu0 %v688, 127
        %v695 = vpop.permute.xlu0 %694
        %696 = vrot.lane.b32.xlu0 %v689, 127
        %v697 = vpop.permute.xlu0 %696
        %698 = vrot.lane.b32.xlu0 %v690, 127
        %v699 = vpop.permute.xlu0 %698
        %v700 = vsel %vm298, %v695, %v697
        %v701 = vsel %vm298, %v697, %v699
        %v705 = vpack.c.bf16 %v700, %v666
        %v706 = vpack.c.bf16 %v701, %v667
        %v707 = vpack.c.bf16 %v699, %v668
        %711 = vrot.lane.b32.xlu0 %v705, 94
        %v712 = vpop.permute.xlu0 %711
        %713 = vrot.lane.b32.xlu0 %v706, 94
        %v714 = vpop.permute.xlu0 %713
        %715 = vrot.lane.b32.xlu0 %v707, 94
        %v716 = vpop.permute.xlu0 %715
        %vm717 = vcmask 769024
        %v718 = vsel %vm717, %v712, %v714
        %v719 = vsel %vm717, %v714, %v716
        %722 = vst [vmem:[#allocation3 + $0x60] sm:$0xff] %v718
        %723 = vst [vmem:[#allocation3 + $0x68] sm:$0xff] %v719
        %v724 = vld [vmem:[#allocation2] sm:$0xff]
        %v725 = vld [vmem:[#allocation2 + $0x8] sm:$0xff]
        %v726 = vld [vmem:[#allocation2 + $0x10] sm:$0xff]
        %v727 = vld [vmem:[%s369] ss:$8 sm:$0x3]
        %v729 = vlaneseq
        %v730 = vshrl.u32 %v729, 7
        %v731 = vsub.s32 0, %v730
        %v732 = vrot.slane %v727, %v731
        %v733 = vlaneseq
        %v734 = vshrl.u32 %v733, 7
        %v735 = vsub.s32 1, %v734
        %v736 = vrot.slane %v727, %v735
        %737 = vrot.lane.b32.xlu0 %v732, 36
        %v738 = vpop.permute.xlu0 %737
        %739 = vrot.lane.b32.xlu0 %v736, 36
        %v740 = vpop.permute.xlu0 %739
        %vm741 = vcmask 293888
        %v742 = vsel %vm741, %v738, %v740
        %v746 = vmul.f32 %v724, %v738
        %v747 = vmul.f32 %v725, %v742
        %v748 = vmul.f32 %v726, %v740
        %v749 = vld [vmem:[%s3] ss:$8 sm:$0x3]
        %v751 = vlaneseq
        %v752 = vshrl.u32 %v751, 7
        %v753 = vsub.s32 0, %v752
        %v754 = vrot.slane %v749, %v753
        %v755 = vlaneseq
        %v756 = vshrl.u32 %v755, 7
        %v757 = vsub.s32 1, %v756
        %v758 = vrot.slane %v749, %v757
        %759 = vrot.lane.b32.xlu0 %v754, 48
        %v760 = vpop.permute.xlu0 %759
        %761 = vrot.lane.b32.xlu0 %v758, 48
        %v762 = vpop.permute.xlu0 %761
        %vm763 = vcmask 392192
        %v764 = vsel %vm763, %v760, %v762
        %v768 = vmul.f32 %v724, %v760
        %v769 = vmul.f32 %v725, %v764
        %v770 = vmul.f32 %v726, %v762
        %774 = vrot.lane.b32.xlu0 %v768, 116
        %v775 = vpop.permute.xlu0 %774
        %776 = vrot.lane.b32.xlu0 %v769, 116
        %v777 = vpop.permute.xlu0 %776
        %778 = vrot.lane.b32.xlu0 %v770, 116
        %v779 = vpop.permute.xlu0 %778
        %v780 = vsel %vm423, %v775, %v777
        %v781 = vsel %vm423, %v777, %v779
        %v785 = vpack.c.bf16 %v780, %v746
        %v786 = vpack.c.bf16 %v781, %v747
        %v787 = vpack.c.bf16 %v779, %v748
        %791 = vrot.lane.b32.xlu0 %v785, 92
        %v792 = vpop.permute.xlu0 %791
        %793 = vrot.lane.b32.xlu0 %v786, 92
        %v794 = vpop.permute.xlu0 %793
        %795 = vrot.lane.b32.xlu0 %v787, 92
        %v796 = vpop.permute.xlu0 %795
        %vm797 = vcmask 752640
        %v798 = vsel %vm797, %v792, %v794
        %v799 = vsel %vm797, %v794, %v796
        %802 = vst [vmem:[#allocation3 + $0x70] sm:$0xff] %v798
        %803 = vst [vmem:[#allocation3 + $0x78] sm:$0xff] %v799
        %v804 = vld [vmem:[#allocation2] sm:$0xff]
        %v805 = vld [vmem:[#allocation2 + $0x8] sm:$0xff]
        %v806 = vld [vmem:[#allocation2 + $0x10] sm:$0xff]
        %v807 = vld [vmem:[%s266] ss:$8 sm:$0x3]
        %v809 = vlaneseq
        %v810 = vshrl.u32 %v809, 7
        %v811 = vsub.s32 0, %v810
        %v812 = vrot.slane %v807, %v811
        %v813 = vlaneseq
        %v814 = vshrl.u32 %v813, 7
        %v815 = vsub.s32 1, %v814
        %v816 = vrot.slane %v807, %v815
        %817 = vrot.lane.b32.xlu0 %v812, 49
        %v818 = vpop.permute.xlu0 %817
        %819 = vrot.lane.b32.xlu0 %v816, 49
        %v820 = vpop.permute.xlu0 %819
        %vm821 = vcmask 400384
        %v822 = vsel %vm821, %v818, %v820
        %v826 = vmul.f32 %v804, %v818
        %v827 = vmul.f32 %v805, %v822
        %v828 = vmul.f32 %v806, %v820
        %832 = vrot.lane.b32.xlu0 %v804, 127
        %v833 = vpop.permute.xlu0 %832
        %834 = vrot.lane.b32.xlu0 %v805, 127
        %v835 = vpop.permute.xlu0 %834
        %836 = vrot.lane.b32.xlu0 %v806, 127
        %v837 = vpop.permute.xlu0 %836
        %v838 = vsel %vm298, %v833, %v835
        %v839 = vsel %vm298, %v835, %v837
        %v843 = vpack.c.bf16 %v838, %v826
        %v844 = vpack.c.bf16 %v839, %v827
        %v845 = vpack.c.bf16 %v837, %v828
        %849 = vrot.lane.b32.xlu0 %v843, 79
        %v850 = vpop.permute.xlu0 %849
        %851 = vrot.lane.b32.xlu0 %v844, 79
        %v852 = vpop.permute.xlu0 %851
        %853 = vrot.lane.b32.xlu0 %v845, 79
        %v854 = vpop.permute.xlu0 %853
        %vm855 = vcmask 646144
        %v856 = vsel %vm855, %v850, %v852
        %v857 = vsel %vm855, %v852, %v854
        %860 = vst [vmem:[#allocation3 + $0x80] sm:$0xff] %v856
        %861 = vst [vmem:[#allocation3 + $0x88] sm:$0xff] %v857
        %v862 = vld [vmem:[#allocation2] sm:$0xff]
        %v863 = vld [vmem:[#allocation2 + $0x8] sm:$0xff]
        %v864 = vld [vmem:[#allocation2 + $0x10] sm:$0xff]
        %v865 = vld [vmem:[%s310] ss:$8 sm:$0x3]
        %v867 = vlaneseq
        %v868 = vshrl.u32 %v867, 7
        %v869 = vsub.s32 0, %v868
        %v870 = vrot.slane %v865, %v869
        %v871 = vlaneseq
        %v872 = vshrl.u32 %v871, 7
        %v873 = vsub.s32 1, %v872
        %v874 = vrot.slane %v865, %v873
        %875 = vrot.lane.b32.xlu0 %v870, 51
        %v876 = vpop.permute.xlu0 %875
        %877 = vrot.lane.b32.xlu0 %v874, 51
        %v878 = vpop.permute.xlu0 %877
        %vm879 = vcmask 416768
        %v880 = vsel %vm879, %v876, %v878
        %v884 = vmul.f32 %v862, %v876
        %v885 = vmul.f32 %v863, %v880
        %v886 = vmul.f32 %v864, %v878
        %v887 = vld [vmem:[%s369] ss:$8 sm:$0x3]
        %v889 = vlaneseq
        %v890 = vshrl.u32 %v889, 7
        %v891 = vsub.s32 0, %v890
        %v892 = vrot.slane %v887, %v891
        %v893 = vlaneseq
        %v894 = vshrl.u32 %v893, 7
        %v895 = vsub.s32 1, %v894
        %v896 = vrot.slane %v887, %v895
        %897 = vrot.lane.b32.xlu0 %v892, 52
        %v898 = vpop.permute.xlu0 %897
        %899 = vrot.lane.b32.xlu0 %v896, 52
        %v900 = vpop.permute.xlu0 %899
        %vm901 = vcmask 424960
        %v902 = vsel %vm901, %v898, %v900
        %v906 = vmul.f32 %v862, %v898
        %v907 = vmul.f32 %v863, %v902
        %v908 = vmul.f32 %v864, %v900
        %912 = vrot.lane.b32.xlu0 %v906, 127
        %v913 = vpop.permute.xlu0 %912
        %914 = vrot.lane.b32.xlu0 %v907, 127
        %v915 = vpop.permute.xlu0 %914
        %916 = vrot.lane.b32.xlu0 %v908, 127
        %v917 = vpop.permute.xlu0 %916
        %v918 = vsel %vm298, %v913, %v915
        %v919 = vsel %vm298, %v915, %v917
        %v923 = vpack.c.bf16 %v918, %v884
        %v924 = vpack.c.bf16 %v919, %v885
        %v925 = vpack.c.bf16 %v917, %v886
        %929 = vrot.lane.b32.xlu0 %v923, 77
        %v930 = vpop.permute.xlu0 %929
        %931 = vrot.lane.b32.xlu0 %v924, 77
        %v932 = vpop.permute.xlu0 %931
        %933 = vrot.lane.b32.xlu0 %v925, 77
        %v934 = vpop.permute.xlu0 %933
        %vm935 = vcmask 629760
        %v936 = vsel %vm935, %v930, %v932
        %v937 = vsel %vm935, %v932, %v934
        %940 = vst [vmem:[#allocation3 + $0x90] sm:$0xff] %v936
        %941 = vst [vmem:[#allocation3 + $0x98] sm:$0xff] %v937
        %v942 = vld [vmem:[#allocation2] sm:$0xff]
        %v943 = vld [vmem:[#allocation2 + $0x8] sm:$0xff]
        %v944 = vld [vmem:[#allocation2 + $0x10] sm:$0xff]
        %v945 = vld [vmem:[%s3] ss:$8 sm:$0x3]
        %v947 = vlaneseq
        %v948 = vshrl.u32 %v947, 7
        %v949 = vsub.s32 0, %v948
        %v950 = vrot.slane %v945, %v949
        %v951 = vlaneseq
        %v952 = vshrl.u32 %v951, 7
        %v953 = vsub.s32 1, %v952
        %v954 = vrot.slane %v945, %v953
        %955 = vrot.lane.b32.xlu0 %v950, 64
        %v956 = vpop.permute.xlu0 %955
        %957 = vrot.lane.b32.xlu0 %v954, 64
        %v958 = vpop.permute.xlu0 %957
        %vm959 = vcmask 523264
        %v960 = vsel %vm959, %v956, %v958
        %v964 = vmul.f32 %v942, %v956
        %v965 = vmul.f32 %v943, %v960
        %v966 = vmul.f32 %v944, %v958
        %v967 = vld [vmem:[%s266] ss:$8 sm:$0x3]
        %v969 = vlaneseq
        %v970 = vshrl.u32 %v969, 7
        %v971 = vsub.s32 0, %v970
        %v972 = vrot.slane %v967, %v971
        %v973 = vlaneseq
        %v974 = vshrl.u32 %v973, 7
        %v975 = vsub.s32 1, %v974
        %v976 = vrot.slane %v967, %v975
        %977 = vrot.lane.b32.xlu0 %v972, 65
        %v978 = vpop.permute.xlu0 %977
        %979 = vrot.lane.b32.xlu0 %v976, 65
        %v980 = vpop.permute.xlu0 %979
        %vm981 = vcmask 531456
        %v982 = vsel %vm981, %v978, %v980
        %v986 = vmul.f32 %v942, %v978
        %v987 = vmul.f32 %v943, %v982
        %v988 = vmul.f32 %v944, %v980
        %992 = vrot.lane.b32.xlu0 %v986, 127
        %v993 = vpop.permute.xlu0 %992
        %994 = vrot.lane.b32.xlu0 %v987, 127
        %v995 = vpop.permute.xlu0 %994
        %996 = vrot.lane.b32.xlu0 %v988, 127
        %v997 = vpop.permute.xlu0 %996
        %v998 = vsel %vm298, %v993, %v995
        %v999 = vsel %vm298, %v995, %v997
        %v1003 = vpack.c.bf16 %v998, %v964
        %v1004 = vpack.c.bf16 %v999, %v965
        %v1005 = vpack.c.bf16 %v997, %v966
        %1009 = vrot.lane.b32.xlu0 %v1003, 64
        %v1010 = vpop.permute.xlu0 %1009
        %1011 = vrot.lane.b32.xlu0 %v1004, 64
        %v1012 = vpop.permute.xlu0 %1011
        %1013 = vrot.lane.b32.xlu0 %v1005, 64
        %v1014 = vpop.permute.xlu0 %1013
        %vm1015 = vcmask 523264
        %v1016 = vsel %vm1015, %v1010, %v1012
        %v1017 = vsel %vm1015, %v1012, %v1014
        %1020 = vst [vmem:[#allocation3 + $0xa0] sm:$0xff] %v1016
        %1021 = vst [vmem:[#allocation3 + $0xa8] sm:$0xff] %v1017
        %v1022 = vld [vmem:[#allocation2] sm:$0xff]
        %v1023 = vld [vmem:[#allocation2 + $0x8] sm:$0xff]
        %v1024 = vld [vmem:[#allocation2 + $0x10] sm:$0xff]
        %v1025 = vld [vmem:[%s310] ss:$8 sm:$0x3]
        %v1027 = vlaneseq
        %v1028 = vshrl.u32 %v1027, 7
        %v1029 = vsub.s32 0, %v1028
        %v1030 = vrot.slane %v1025, %v1029
        %v1031 = vlaneseq
        %v1032 = vshrl.u32 %v1031, 7
        %v1033 = vsub.s32 1, %v1032
        %v1034 = vrot.slane %v1025, %v1033
        %1035 = vrot.lane.b32.xlu0 %v1030, 67
        %v1036 = vpop.permute.xlu0 %1035
        %1037 = vrot.lane.b32.xlu0 %v1034, 67
        %v1038 = vpop.permute.xlu0 %1037
        %vm1039 = vcmask 547840
        %v1040 = vsel %vm1039, %v1036, %v1038
        %v1044 = vmul.f32 %v1022, %v1036
        %v1045 = vmul.f32 %v1023, %v1040
        %v1046 = vmul.f32 %v1024, %v1038
        %1050 = vrot.lane.b32.xlu0 %v1044, 127
        %v1051 = vpop.permute.xlu0 %1050
        %1052 = vrot.lane.b32.xlu0 %v1045, 127
        %v1053 = vpop.permute.xlu0 %1052
        %1054 = vrot.lane.b32.xlu0 %v1046, 127
        %v1055 = vpop.permute.xlu0 %1054
        %v1056 = vsel %vm298, %v1051, %v1053
        %v1057 = vsel %vm298, %v1053, %v1055
        %v1061 = vpack.c.bf16 %v1056, %v1022
        %v1062 = vpack.c.bf16 %v1057, %v1023
        %v1063 = vpack.c.bf16 %v1055, %v1024
        %1067 = vrot.lane.b32.xlu0 %v1061, 62
        %v1068 = vpop.permute.xlu0 %1067
        %1069 = vrot.lane.b32.xlu0 %v1062, 62
        %v1070 = vpop.permute.xlu0 %1069
        %1071 = vrot.lane.b32.xlu0 %v1063, 62
        %v1072 = vpop.permute.xlu0 %1071
        %vm1073 = vcmask 506880
        %v1074 = vsel %vm1073, %v1068, %v1070
        %v1075 = vsel %vm1073, %v1070, %v1072
        %1078 = vst [vmem:[#allocation3 + $0xb0] sm:$0xff] %v1074
        %1079 = vst [vmem:[#allocation3 + $0xb8] sm:$0xff] %v1075
        %v1080 = vld [vmem:[#allocation2] sm:$0xff]
        %v1081 = vld [vmem:[#allocation2 + $0x8] sm:$0xff]
        %v1082 = vld [vmem:[#allocation2 + $0x10] sm:$0xff]
        %v1083 = vld [vmem:[%s369] ss:$8 sm:$0x3]
        %v1085 = vlaneseq
        %v1086 = vshrl.u32 %v1085, 7
        %v1087 = vsub.s32 0, %v1086
        %v1088 = vrot.slane %v1083, %v1087
        %v1089 = vlaneseq
        %v1090 = vshrl.u32 %v1089, 7
        %v1091 = vsub.s32 1, %v1090
        %v1092 = vrot.slane %v1083, %v1091
        %1093 = vrot.lane.b32.xlu0 %v1088, 68
        %v1094 = vpop.permute.xlu0 %1093
        %1095 = vrot.lane.b32.xlu0 %v1092, 68
        %v1096 = vpop.permute.xlu0 %1095
        %vm1097 = vcmask 556032
        %v1098 = vsel %vm1097, %v1094, %v1096
        %v1102 = vmul.f32 %v1080, %v1094
        %v1103 = vmul.f32 %v1081, %v1098
        %v1104 = vmul.f32 %v1082, %v1096
        %v1105 = vpack.c.bf16 0.0, %v1102
        %v1106 = vpack.c.bf16 0.0, %v1103
        %v1107 = vpack.c.bf16 0.0, %v1104
        %1111 = vrot.lane.b32.xlu0 %v1105, 60
        %v1112 = vpop.permute.xlu0 %1111
        %1113 = vrot.lane.b32.xlu0 %v1106, 60
        %v1114 = vpop.permute.xlu0 %1113
        %1115 = vrot.lane.b32.xlu0 %v1107, 60
        %v1116 = vpop.permute.xlu0 %1115
        %vm1117 = vcmask 490496
        %v1118 = vsel %vm1117, %v1112, %v1114
        %v1119 = vsel %vm1117, %v1114, %v1116
        %1122 = vst [vmem:[#allocation3 + $0xc0] sm:$0xff] %v1118
        %1123 = vst [vmem:[#allocation3 + $0xc8] sm:$0xff] %v1119
        %v1124 = vld [vmem:[#allocation7] sm:$0xff]
        %v1125 = vld [vmem:[#allocation3] sm:$0xff]
        %v1126 = vld [vmem:[#allocation3 + $0x8] sm:$0xff]
        %v1127 = vld [vmem:[#allocation3 + $0x10] sm:$0xff]
        %v1128 = vld [vmem:[#allocation3 + $0x18] sm:$0xff]
        %v1129 = vld [vmem:[#allocation3 + $0x20] sm:$0xff]
        %v1130 = vld [vmem:[#allocation3 + $0x28] sm:$0xff]
        %v1131 = vld [vmem:[#allocation3 + $0x30] sm:$0xff]
        %v1132 = vld [vmem:[#allocation3 + $0x38] sm:$0xff]
        %v1133 = vld [vmem:[#allocation3 + $0x40] sm:$0xff]
        %v1134 = vld [vmem:[#allocation3 + $0x48] sm:$0xff]
        %v1135 = vld [vmem:[#allocation3 + $0x50] sm:$0xff]
        %v1136 = vld [vmem:[#allocation3 + $0x58] sm:$0xff]
        %v1137 = vld [vmem:[#allocation3 + $0x60] sm:$0xff]
        %v1138 = vld [vmem:[#allocation3 + $0x68] sm:$0xff]
        %v1139 = vld [vmem:[#allocation3 + $0x70] sm:$0xff]
        %v1140 = vld [vmem:[#allocation3 + $0x78] sm:$0xff]
        %v1141 = vld [vmem:[#allocation3 + $0x80] sm:$0xff]
        %v1142 = vld [vmem:[#allocation3 + $0x88] sm:$0xff]
        %v1143 = vld [vmem:[#allocation3 + $0x90] sm:$0xff]
        %v1144 = vld [vmem:[#allocation3 + $0x98] sm:$0xff]
        %v1145 = vld [vmem:[#allocation3 + $0xa0] sm:$0xff]
        %v1146 = vld [vmem:[#allocation3 + $0xa8] sm:$0xff]
        %v1147 = vld [vmem:[#allocation3 + $0xb0] sm:$0xff]
        %v1148 = vld [vmem:[#allocation3 + $0xb8] sm:$0xff]
        %v1149 = vld [vmem:[#allocation3 + $0xc0] sm:$0xff]
        %v1150 = vld [vmem:[#allocation3 + $0xc8] sm:$0xff]
        %v1151 = vld [vmem:[%s2] sm:$0xff]
        %1153 = vset.pattern.permute.xlu0 0
        %1154 = vperm.xlu0 %1153, %v1151
        %v1155 = vpop.permute.xlu0 %1154
        %v1158 = vunpack.c.l.b16 %v1124
        %v1159 = vunpack.c.h.b16 %v1124
        %v1160 = vpack.c.b16 %v1158, %v1158
        %v1161 = vpack.c.b16 %v1159, %v1159
        %vm1163 = vcmask 654336
        %v1165 = vsel %vm1163, %v1161, 0
        %1167 = vmatprep.subr.bf16.mxu0 %v1126
        %1168 = vmatpush1.bf16.msra.mxu0 %v1125
        %1169 = vmatprep.subr.bf16.mxu0 %v1128
        %1170 = vmatpush1.bf16.msra.mxu0 %v1127
        %1171 = vmatprep.subr.bf16.mxu0 %v1130
        %1172 = vmatpush1.bf16.msra.mxu0 %v1129
        %1173 = vmatprep.subr.bf16.mxu0 %v1132
        %1174 = vmatpush1.bf16.msra.mxu0 %v1131
        %1175 = vmatprep.subr.bf16.mxu0 %v1134
        %1176 = vmatpush1.bf16.msra.mxu0 %v1133
        %1177 = vmatprep.subr.bf16.mxu0 %v1136
        %1178 = vmatpush1.bf16.msra.mxu0 %v1135
        %1179 = vmatprep.subr.bf16.mxu0 %v1138
        %1180 = vmatpush1.bf16.msra.mxu0 %v1137
        %1181 = vmatprep.subr.bf16.mxu0 %v1140
        %1182 = vmatpush1.bf16.msra.mxu0 %v1139
        %1183 = vmatprep.subr.bf16.mxu0 %v1142
        %1184 = vmatpush1.bf16.msra.mxu0 %v1141
        %1185 = vmatprep.subr.bf16.mxu0 %v1144
        %1186 = vmatpush1.bf16.msra.mxu0 %v1143
        %1187 = vmatprep.subr.bf16.mxu0 %v1146
        %1188 = vmatpush1.bf16.msra.mxu0 %v1145
        %1189 = vmatprep.subr.bf16.mxu0 %v1148
        %1190 = vmatpush1.bf16.msra.mxu0 %v1147
        %1191 = vmatprep.subr.bf16.mxu0 %v1150
        %1192 = vmatpush1.bf16.msra.mxu0 %v1149
        %1193 = vmatprep.subr.bf16.mxu0 0
        %1194 = vmatpush1.bf16.msra.mxu0 0
        %1195 = vmatprep.subr.bf16.mxu0 0
        %1196 = vmatpush1.bf16.msra.mxu0 0
        %1197 = vmatprep.subr.bf16.mxu0 0
        %1198 = vmatpush1.bf16.msra.mxu0 0
        %1199 = vmatprep.mubr.bf16.mxu0 %v1165
        %1200 = vmatmul.mubr.bf16.gmra.mrb[0].mxu0 %v1160
        %v1201 = vpop.f32.mrb[0].mxu0
        %v1202 = vadd.f32 %v1155, %v1201
        %v1203 = vpop.f32.mrb[0].mxu0
        %v1204 = vadd.f32 %v1155, %v1203
        %v1205 = vpop.f32.mrb[0].mxu0
        %v1206 = vpop.f32.mrb[0].mxu0
        %1207 = vdwg.mxu0
        %1208 = vst [vmem:[%s226] sm:$0xff] %v1202
        %1209 = vst [vmem:[%s226 + $0x8] sm:$0xff] %v1204
        %s1210 = sand.u32 %s119, 1
        %s1211 = scalar_lea.sflag [#allocation6], %s1210
        %s1212 = sand.u32 %s119, 1
        %s1213 = smul.addr %s1212, 16
        %s1214 = scalar_lea.vmem [#allocation9], %s1213
        // Predicated region
        $region45: #{tpu_custom_call.1} parent=35 // pred_check
          %p1215 = pneg %p129
        $region46: #{tpu_custom_call.1} parent=35 // pred_check_branch
          %1217 = sbr.rel (%p1215) target = $region48
        $region47: #{tpu_custom_call.1} parent=35 // pred_region
          %s1219 = ssub.s32 256, 256
          %1220 = vsyncadd %s1211, %s1219
          %s1221 = smul.addr %s22, 2
          %s1222 = smul.addr %s1221, 128
          %s1223 = scalar_lea.hbm %s4, %s1222
          %s1225 = sshll.u32 %s1214, 4
          %s1226 = int_to_ptr.vmem [resolvable:$true] %s1225
          %1228 = dma.vmem_to_hbm [thread:$0]  %s1226, 256, %s1223, %s1211
        $region48: #{tpu_custom_call.1} parent=35 // pred_fallthru
          _
      $region36: #{tpu_custom_call.1} parent=5 // pred_fallthru
        _
      %p1229 = scmp.le.s32.totalorder 2, %s17
      // Predicated region
      $region49: #{tpu_custom_call.1} parent=5 // pred_check
        %p1230 = pneg %p1229
      $region50: #{tpu_custom_call.1} parent=5 // pred_check_branch
        %1232 = sbr.rel (%p1230) target = $region52
      $region51: #{tpu_custom_call.1} parent=5 // pred_region
        %s1233 = ssub.s32 %s17, 2
        // Predicated region
        $region53: #{tpu_custom_call.1} parent=51 // pred_check
          %p1234 = pneg %p135
        $region54: #{tpu_custom_call.1} parent=51 // pred_check_branch
          %1236 = sbr.rel (%p1234) target = $region56
        $region55: #{tpu_custom_call.1} parent=51 // pred_region
          %s1237 = sand.u32 %s120, 1
          %s1238 = scalar_lea.sflag [#allocation6], %s1237
          %s1239 = sand.u32 %s120, 1
          %s1240 = smul.addr %s1239, 16
          %s1241 = scalar_lea.vmem [#allocation9], %s1240
          %1242 = dma.done %s1238, 256
        $region56: #{tpu_custom_call.1} parent=51 // pred_fallthru
          _
      $region52: #{tpu_custom_call.1} parent=5 // pred_fallthru
        _
    $region6: #{tpu_custom_call.1} parent=1 // loop_footer
      %s21 = sadd.s32 1, %s17
    $region7: #{tpu_custom_call.1} parent=1 // loop_footer_branch
      %16 = sbr.rel target = $region3
    $region8: #{tpu_custom_call.1} parent=1 // loop_exit
      _
    %1243 = vsyncpa [#allocation5], 1
    %s1244 = scalar_lea.sflag [#allocation5], 1
    %1245 = vsyncpa %s1244, 1
    %1246 = vsyncpa [#allocation8], 1
    %1247 = vsyncpa [#allocation6], 1
    %s1248 = scalar_lea.sflag [#allocation6], 1
    %1249 = vsyncpa %s1248, 1

</llo_original>
